<compile_context>
chip_gen: v7x
topology: tpu7x:2x2x1
jax: 0.10.0
libtpu: 0.0.40
codegen_flags: <defaults>
</compile_context>

<pallas_src>
import functools

import jax
import jax.numpy as jnp
from jax.experimental import pallas as pl
from jax.experimental.pallas import tpu as pltpu


def _fused_causal_conv_kernel(x_ref, w_ref, b_ref, o_ref, xp_sc, halo_sc):
    """All CausalConvBlock layers for one (batch, L-tile) grid step.

    x_ref  : (1, TM, D)        activation tile (input to layer 0), model dtype
    w_ref  : (NL, K*D, 2D)     conv weights, tap-major rows per layer, bf16
    b_ref  : (NL, 2D)          conv bias, f32
    o_ref  : (1, TM, D)        output tile
    xp_sc  : (HP + TM, D)      persistent causally-padded activation buffer (bf16)
    halo_sc: (NL*HALO, D)      last K-1 rows of each layer's input from the
                               previous L-tile (carried across L-tiles), bf16
    """
    j = pl.program_id(1)                    # L-tile index (innermost, sequential)

    NL = b_ref.shape[0]
    _, TM, D = x_ref.shape
    KD = w_ref.shape[1]
    K = KD // D
    h = K - 1
    HP = xp_sc.shape[0] - TM                # aligned offset of the tile in xp_sc
    HALO = halo_sc.shape[0] // NL

    if h > 0:
        @pl.when(j == 0)
        def _zero_halo():                   # first tile: causal left pad is zero
            halo_sc[...] = jnp.zeros_like(halo_sc)

    # Stage the layer-0 input into the persistent activation buffer (single
    # cast to the compute dtype per grid step).
    xp_sc[pl.ds(HP, TM), :] = x_ref[0].astype(xp_sc.dtype)

    bias = b_ref[...].astype(jnp.float32)   # (NL, 2D), tiny

    # Static unroll over layers (NL is small for CKT). TODO(synk): switch to
    # lax.fori_loop for NL >= ~8 to bound live ranges.
    for l in range(NL):
        if h > 0:
            # Tail of this layer's input -> halo for the next L-tile.
            new_halo = xp_sc[pl.ds(HP + TM - h, h), :]
            # Previous L-tile's tail -> causal left pad of this tile.
            xp_sc[pl.ds(HP - h, h), :] = halo_sc[pl.ds(l * HALO, h), :]

        # im2col: K shifted views lane-concatenated into a (TM, K*D) LHS, one
        # MXU matmul against (K*D, 2D) weights, f32 accumulation.
        lhs = jnp.concatenate(
            [xp_sc[pl.ds(HP - h + k, TM), :] for k in range(K)], axis=1)
        acc = jnp.dot(lhs, w_ref[l], preferred_element_type=jnp.float32)
        acc = acc + bias[l:l + 1, :]                    # bias added once

        glu = acc[:, :D] * jax.nn.sigmoid(acc[:, D:])   # GLU
        # Residual: tap k = K-1 of `lhs` is exactly the unshifted input tile,
        # so no extra VMEM read is needed.
        out = glu + lhs[:, (K - 1) * D:].astype(jnp.float32)

        if l == NL - 1:
            o_ref[0] = out.astype(o_ref.dtype)          # write straight out
        else:
            xp_sc[pl.ds(HP, TM), :] = out.astype(xp_sc.dtype)

        if h > 0:
            halo_sc[pl.ds(l * HALO, h), :] = new_halo   # carry halo forward


def _vmem_capacity_bytes():
    """Generation-aware VMEM capacity (falls back to v7x's 64 MiB)."""
    try:
        return int(pltpu.get_tpu_info().vmem_capacity_bytes)
    except Exception:  # pragma: no cover - conservative default
        return 64 * 1024 * 1024


def causal_conv_net(x, params, *, tile_m=None, compute_dtype=jnp.bfloat16):
    """x: (B, L, D); params: list of (w (K, D, 2D), b (2D,)). Returns (B, L, D)."""
    B, L, D = x.shape
    NL = len(params)
    K = params[0][0].shape[0]
    h = K - 1
    HALO = max(h, 1)

    itm_x = jnp.dtype(x.dtype).itemsize
    itm_c = jnp.dtype(compute_dtype).itemsize
    pad_align = 16 if itm_c < 4 else 8
    HP = ((h + pad_align - 1) // pad_align) * pad_align if h > 0 else 0

    vmem_budget = (_vmem_capacity_bytes() * 3) // 4     # headroom for Mosaic

    def vmem_est(tm):
        return (2 * tm * D * itm_x                      # input tile, 2-buffered
                + 2 * tm * D * itm_x                    # output tile, 2-buffered
                + 2 * NL * K * D * (2 * D) * itm_c      # weights (2x pipeline bufs)
                + 2 * NL * (2 * D) * 4                  # bias
                + (HP + tm) * D * itm_c                 # padded activation scratch
                + NL * HALO * D * itm_c                 # halo scratch
                + tm * K * D * itm_c                    # live im2col LHS
                + 2 * tm * (2 * D) * 4)                 # live f32 acc / glu

    if tile_m is None:
        tile_m = L
        for cand in (2048, 1024, 512, 256, 128, 64, 32, 16, 8):
            if L % cand == 0 and cand >= max(h, 1) and vmem_est(cand) <= vmem_budget:
                tile_m = cand
                break
    if L % tile_m != 0:
        raise ValueError("L must be divisible by tile_m")
    if tile_m != L and tile_m % 8 != 0:
        raise ValueError("tile_m must be a multiple of 8 (sublane tiling)")
    if tile_m < h:
        raise ValueError("tile_m must be >= kernel_size - 1 (single-tile halo)")
    n_l_tiles = L // tile_m

    # Stack / pack parameters: weights bf16 (half HBM + VMEM), bias f32.
    # Per-layer weight is reshaped (K, D, 2D) -> (K*D, 2D), tap-major rows,
    # matching the lane-concatenated im2col LHS in the kernel.
    w_all = jnp.stack([w for w, _ in params]).astype(compute_dtype)   # (NL,K,D,2D)
    w_all = w_all.reshape(NL, K * D, 2 * D)
    b_all = jnp.stack([b.reshape(-1) for _, b in params]).astype(jnp.float32)

    # --- scheduling hints ----------------------------------------------------
    flops = 2 * B * L * K * D * (2 * D) * NL
    transcendentals = B * L * D * NL                        # sigmoid
    bytes_accessed = (x.size * itm_x                        # activations in
                      + x.size * itm_x                      # activations out
                      + w_all.size * itm_c
                      + b_all.size * 4)

    vmem_limit = int(min(max(2 * vmem_est(tile_m), 16 * 1024 * 1024), vmem_budget))

    return pl.pallas_call(
        _fused_causal_conv_kernel,
        out_shape=jax.ShapeDtypeStruct((B, L, D), x.dtype),
        grid_spec=pltpu.PrefetchScalarGridSpec(
            num_scalar_prefetch=0,
            grid=(B, n_l_tiles),                            # L-tiles innermost
            in_specs=[
                pl.BlockSpec((1, tile_m, D), lambda b, j: (b, j, 0)),
                # Constant index_map: never re-DMA'd by the pipeline.
                pl.BlockSpec((NL, K * D, 2 * D), lambda b, j: (0, 0, 0)),
                pl.BlockSpec((NL, 2 * D), lambda b, j: (0, 0)),
            ],
            out_specs=pl.BlockSpec((1, tile_m, D), lambda b, j: (b, j, 0)),
            scratch_shapes=[
                pltpu.VMEM((HP + tile_m, D), compute_dtype),
                pltpu.VMEM((NL * HALO, D), compute_dtype),
            ],
        ),
        compiler_params=pltpu.CompilerParams(
            # B parallel (feeds both v7x TensorCores when B >= 2); the L axis
            # must stay sequential because of the carried causal halo.
            dimension_semantics=("parallel", "arbitrary"),
            vmem_limit_bytes=vmem_limit,
        ),
        cost_estimate=pl.CostEstimate(
            flops=int(flops),
            transcendentals=int(transcendentals),
            bytes_accessed=int(bytes_accessed),
        ),
        # Output reuses x's buffer when the caller donates it (shapes/dtypes
        # match and each input tile is consumed before its writeback).
        input_output_aliases={0: 0},
    )(x, w_all, b_all)


def init_params(key, dim, num_layers, kernel_size):
    """Deterministic synthetic params. PyTorch Conv1d weight is (2D, D, K);
    stored here as (K, D, 2D) so each tap is a (D, 2D) matmul operand."""
    params = []
    fan_in = dim * kernel_size
    bound = 1.0 / (fan_in ** 0.5)
    for _ in range(num_layers):
        key, kw, kb = jax.random.split(key, 3)
        w_torch = jax.random.uniform(kw, (2 * dim, dim, kernel_size),
                                     jnp.float32, -bound, bound)
        b = jax.random.uniform(kb, (2 * dim,), jnp.float32, -bound, bound)
        w = jnp.transpose(w_torch, (2, 1, 0))               # (K, D, 2D)
        params.append((w, b))
    return params


def _reference(x, params, compute_dtype=jnp.bfloat16):
    """Pure-JAX reference with the kernel's numerics: bf16 activation stream /
    MXU operands, f32 accumulation, last layer's output left in f32."""
    act = x.astype(jnp.float32)
    for w, b in params:
        K, D, _ = w.shape
        L = act.shape[1]
        xc = act.astype(compute_dtype)                      # bf16 activation stream
        wc = w.astype(compute_dtype)
        xp = jnp.pad(xc, ((0, 0), (K - 1, 0), (0, 0)))
        acc = jnp.einsum("bld,de->ble", xp[:, 0:L, :], wc[0],
                         preferred_element_type=jnp.float32)
        for k in range(1, K):
            acc = acc + jnp.einsum("bld,de->ble", xp[:, k:k + L, :], wc[k],
                                   preferred_element_type=jnp.float32)
        acc = acc + b.astype(jnp.float32)[None, None, :]
        glu = acc[..., :D] * jax.nn.sigmoid(acc[..., D:])
        act = glu + xc.astype(jnp.float32)                  # residual vs bf16 stream
    return act.astype(x.dtype)


if __name__ == "__main__":
    # Small but lane-aligned shapes: D % 128 == 0, two L-tiles so the carried
    # causal halo path is actually exercised.
    B, L, D = 2, 256, 128
    num_layers, kernel_size, dropout = 2, 3, 0.1

    key = jax.random.PRNGKey(0)
    key, kx = jax.random.split(key)
    x = jax.random.normal(kx, (B, L, D), jnp.float32)
    params = init_params(key, D, num_layers, kernel_size)

    run = jax.jit(functools.partial(causal_conv_net, tile_m=128))
    out = jax.block_until_ready(run(x, params))
    ref = jax.block_until_ready(_reference(x, params))

    assert out.shape == (B, L, D)
    max_err = float(jnp.max(jnp.abs(out - ref)))
    assert jnp.allclose(out, ref, atol=1e-2, rtol=1e-2), f"max err {max_err}"
    print("KERNEL_OK")
</pallas_src>

<mosaic_0001>
module attributes {stable_mosaic.version = 11 : i64} {
  func.func @_fused_causal_conv_kernel(%arg0: i32, %arg1: i32, %arg2: memref<1x128x128xf32, #tpu.memory_space<vmem>>, %arg3: memref<2x384x256xbf16, #tpu.memory_space<vmem>>, %arg4: memref<2x256xf32, #tpu.memory_space<vmem>>, %arg5: memref<1x128x128xf32, #tpu.memory_space<vmem>>, %arg6: memref<144x128xbf16, #tpu.memory_space<vmem>>, %arg7: memref<4x128xbf16, #tpu.memory_space<vmem>>) attributes {dimension_semantics = [#tpu.dimension_semantics<parallel>, #tpu.dimension_semantics<arbitrary>], iteration_bounds = array<i64: 2, 2>, scalar_prefetch = 0 : i64, scratch_operands = 2 : i64, tpu.core_type = #tpu.core_type<tc>, window_params = [{transform_indices = @transform_0, window_bounds = array<i64: 1, 128, 128>}, {pipeline_mode = #tpu.pipeline_mode<synchronous>, transform_indices = @transform_1, window_bounds = array<i64: 2, 384, 256>}, {pipeline_mode = #tpu.pipeline_mode<synchronous>, transform_indices = @transform_2, window_bounds = array<i64: 2, 256>}, {transform_indices = @transform_3, window_bounds = array<i64: 1, 128, 128>}]} {
    %c0_i32 = arith.constant 0 : i32
    %0 = arith.cmpi eq, %arg1, %c0_i32 : i32
    %1 = arith.extui %0 : i1 to i32
    %c0_i32_0 = arith.constant 0 : i32
    %2 = arith.cmpi ne, %1, %c0_i32_0 : i32
    scf.if %2 {
      %cst_43 = arith.constant 0.000000e+00 : bf16
      %63 = vector.broadcast %cst_43 : bf16 to vector<4x128xbf16>
      %c0_44 = arith.constant 0 : index
      %c0_45 = arith.constant 0 : index
      %64 = vector.load %arg7[%c0_44, %c0_45] : memref<4x128xbf16, #tpu.memory_space<vmem>>, vector<4x128xbf16>
      tpu.vector_store %arg7[%c0_44, %c0_45], %63 {strides = array<i32>} : memref<4x128xbf16, #tpu.memory_space<vmem>>, vector<4x128xbf16>,
    } else {
    }
    %c0 = arith.constant 0 : index
    %c0_1 = arith.constant 0 : index
    %c0_2 = arith.constant 0 : index
    %3 = vector.load %arg2[%c0, %c0_1, %c0_2] : memref<1x128x128xf32, #tpu.memory_space<vmem>>, vector<1x128x128xf32>
    %4 = vector.shape_cast %3 : vector<1x128x128xf32> to vector<128x128xf32>
    %5 = arith.truncf %4 : vector<128x128xf32> to vector<128x128xbf16>
    %c16 = arith.constant 16 : index
    %c0_3 = arith.constant 0 : index
    %6 = vector.load %arg6[%c16, %c0_3] : memref<144x128xbf16, #tpu.memory_space<vmem>>, vector<128x128xbf16>
    tpu.vector_store %arg6[%c16, %c0_3], %5 {strides = array<i32>} : memref<144x128xbf16, #tpu.memory_space<vmem>>, vector<128x128xbf16>,
    %c0_4 = arith.constant 0 : index
    %c0_5 = arith.constant 0 : index
    %7 = vector.load %arg4[%c0_4, %c0_5] : memref<2x256xf32, #tpu.memory_space<vmem>>, vector<2x256xf32>
    %c142 = arith.constant 142 : index
    %c0_6 = arith.constant 0 : index
    %8 = vector.load %arg6[%c142, %c0_6] : memref<144x128xbf16, #tpu.memory_space<vmem>>, vector<2x128xbf16>
    %c0_7 = arith.constant 0 : index
    %c0_8 = arith.constant 0 : index
    %9 = vector.load %arg7[%c0_7, %c0_8] : memref<4x128xbf16, #tpu.memory_space<vmem>>, vector<2x128xbf16>
    %c14 = arith.constant 14 : index
    %c0_9 = arith.constant 0 : index
    %10 = vector.load %arg6[%c14, %c0_9] : memref<144x128xbf16, #tpu.memory_space<vmem>>, vector<2x128xbf16>
    tpu.vector_store %arg6[%c14, %c0_9], %9 {strides = array<i32>} : memref<144x128xbf16, #tpu.memory_space<vmem>>, vector<2x128xbf16>,
    %c14_10 = arith.constant 14 : index
    %c0_11 = arith.constant 0 : index
    %11 = vector.load %arg6[%c14_10, %c0_11] : memref<144x128xbf16, #tpu.memory_space<vmem>>, vector<128x128xbf16>
    %c15 = arith.constant 15 : index
    %c0_12 = arith.constant 0 : index
    %12 = vector.load %arg6[%c15, %c0_12] : memref<144x128xbf16, #tpu.memory_space<vmem>>, vector<128x128xbf16>
    %c16_13 = arith.constant 16 : index
    %c0_14 = arith.constant 0 : index
    %13 = vector.load %arg6[%c16_13, %c0_14] : memref<144x128xbf16, #tpu.memory_space<vmem>>, vector<128x128xbf16>
    %14 = tpu.concatenate %11, %12, %13 in 1 : vector<128x128xbf16>, vector<128x128xbf16>, vector<128x128xbf16> -> vector<128x384xbf16>
    %c0_15 = arith.constant 0 : index
    %c0_16 = arith.constant 0 : index
    %c0_17 = arith.constant 0 : index
    %15 = vector.load %arg3[%c0_15, %c0_16, %c0_17] : memref<2x384x256xbf16, #tpu.memory_space<vmem>>, vector<1x384x256xbf16>
    %16 = vector.shape_cast %15 : vector<1x384x256xbf16> to vector<384x256xbf16>
    %cst = arith.constant dense<0.000000e+00> : vector<128x256xf32>
    %17 = tpu.matmul %14, %16, %cst {dimension_numbers = #tpu.dot_dimension_numbers<[1], [0], [0], [1], [0, 0, 1, 1], [], []>} : vector<128x384xbf16>, vector<384x256xbf16>, vector<128x256xf32> -> vector<128x256xf32>
    %18 = vector.extract_strided_slice %7 {offsets = [0, 0], sizes = [1, 256], strides = [1, 1]} : vector<2x256xf32> to vector<1x256xf32>
    %19 = vector.broadcast %18 : vector<1x256xf32> to vector<128x256xf32>
    %20 = arith.addf %17, %19 : vector<128x256xf32>
    %21 = vector.extract_strided_slice %20 {offsets = [0, 0], sizes = [128, 128], strides = [1, 1]} : vector<128x256xf32> to vector<128x128xf32>
    %22 = vector.extract_strided_slice %20 {offsets = [0, 128], sizes = [128, 128], strides = [1, 1]} : vector<128x256xf32> to vector<128x128xf32>
    %23 = arith.negf %22 : vector<128x128xf32>
    %24 = math.exp %23 : vector<128x128xf32>
    %cst_18 = arith.constant 1.000000e+00 : f32
    %25 = vector.broadcast %cst_18 : f32 to vector<128x128xf32>
    %26 = arith.addf %25, %24 : vector<128x128xf32>
    %27 = arith.divf %25, %26 : vector<128x128xf32>
    %28 = arith.mulf %21, %27 : vector<128x128xf32>
    %29 = vector.extract_strided_slice %14 {offsets = [0, 256], sizes = [128, 128], strides = [1, 1]} : vector<128x384xbf16> to vector<128x128xbf16>
    %30 = arith.extf %29 : vector<128x128xbf16> to vector<128x128xf32>
    %31 = arith.addf %28, %30 : vector<128x128xf32>
    %32 = arith.truncf %31 : vector<128x128xf32> to vector<128x128xbf16>
    %c16_19 = arith.constant 16 : index
    %c0_20 = arith.constant 0 : index
    %33 = vector.load %arg6[%c16_19, %c0_20] : memref<144x128xbf16, #tpu.memory_space<vmem>>, vector<128x128xbf16>
    tpu.vector_store %arg6[%c16_19, %c0_20], %32 {strides = array<i32>} : memref<144x128xbf16, #tpu.memory_space<vmem>>, vector<128x128xbf16>,
    %c0_21 = arith.constant 0 : index
    %c0_22 = arith.constant 0 : index
    %34 = vector.load %arg7[%c0_21, %c0_22] : memref<4x128xbf16, #tpu.memory_space<vmem>>, vector<2x128xbf16>
    tpu.vector_store %arg7[%c0_21, %c0_22], %8 {strides = array<i32>} : memref<4x128xbf16, #tpu.memory_space<vmem>>, vector<2x128xbf16>,
    %c142_23 = arith.constant 142 : index
    %c0_24 = arith.constant 0 : index
    %35 = vector.load %arg6[%c142_23, %c0_24] : memref<144x128xbf16, #tpu.memory_space<vmem>>, vector<2x128xbf16>
    %c2 = arith.constant 2 : index
    %c0_25 = arith.constant 0 : index
    %36 = vector.load %arg7[%c2, %c0_25] : memref<4x128xbf16, #tpu.memory_space<vmem>>, vector<2x128xbf16>
    %c14_26 = arith.constant 14 : index
    %c0_27 = arith.constant 0 : index
    %37 = vector.load %arg6[%c14_26, %c0_27] : memref<144x128xbf16, #tpu.memory_space<vmem>>, vector<2x128xbf16>
    tpu.vector_store %arg6[%c14_26, %c0_27], %36 {strides = array<i32>} : memref<144x128xbf16, #tpu.memory_space<vmem>>, vector<2x128xbf16>,
    %c14_28 = arith.constant 14 : index
    %c0_29 = arith.constant 0 : index
    %38 = vector.load %arg6[%c14_28, %c0_29] : memref<144x128xbf16, #tpu.memory_space<vmem>>, vector<128x128xbf16>
    %c15_30 = arith.constant 15 : index
    %c0_31 = arith.constant 0 : index
    %39 = vector.load %arg6[%c15_30, %c0_31] : memref<144x128xbf16, #tpu.memory_space<vmem>>, vector<128x128xbf16>
    %c16_32 = arith.constant 16 : index
    %c0_33 = arith.constant 0 : index
    %40 = vector.load %arg6[%c16_32, %c0_33] : memref<144x128xbf16, #tpu.memory_space<vmem>>, vector<128x128xbf16>
    %41 = tpu.concatenate %38, %39, %40 in 1 : vector<128x128xbf16>, vector<128x128xbf16>, vector<128x128xbf16> -> vector<128x384xbf16>
    %c1 = arith.constant 1 : index
    %c0_34 = arith.constant 0 : index
    %c0_35 = arith.constant 0 : index
    %42 = vector.load %arg3[%c1, %c0_34, %c0_35] : memref<2x384x256xbf16, #tpu.memory_space<vmem>>, vector<1x384x256xbf16>
    %43 = vector.shape_cast %42 : vector<1x384x256xbf16> to vector<384x256xbf16>
    %cst_36 = arith.constant dense<0.000000e+00> : vector<128x256xf32>
    %44 = tpu.matmul %41, %43, %cst_36 {dimension_numbers = #tpu.dot_dimension_numbers<[1], [0], [0], [1], [0, 0, 1, 1], [], []>} : vector<128x384xbf16>, vector<384x256xbf16>, vector<128x256xf32> -> vector<128x256xf32>
    %45 = vector.extract_strided_slice %7 {offsets = [1, 0], sizes = [1, 256], strides = [1, 1]} : vector<2x256xf32> to vector<1x256xf32>
    %46 = vector.broadcast %45 : vector<1x256xf32> to vector<128x256xf32>
    %47 = arith.addf %44, %46 : vector<128x256xf32>
    %48 = vector.extract_strided_slice %47 {offsets = [0, 0], sizes = [128, 128], strides = [1, 1]} : vector<128x256xf32> to vector<128x128xf32>
    %49 = vector.extract_strided_slice %47 {offsets = [0, 128], sizes = [128, 128], strides = [1, 1]} : vector<128x256xf32> to vector<128x128xf32>
    %50 = arith.negf %49 : vector<128x128xf32>
    %51 = math.exp %50 : vector<128x128xf32>
    %cst_37 = arith.constant 1.000000e+00 : f32
    %52 = vector.broadcast %cst_37 : f32 to vector<128x128xf32>
    %53 = arith.addf %52, %51 : vector<128x128xf32>
    %54 = arith.divf %52, %53 : vector<128x128xf32>
    %55 = arith.mulf %48, %54 : vector<128x128xf32>
    %56 = vector.extract_strided_slice %41 {offsets = [0, 256], sizes = [128, 128], strides = [1, 1]} : vector<128x384xbf16> to vector<128x128xbf16>
    %57 = arith.extf %56 : vector<128x128xbf16> to vector<128x128xf32>
    %58 = arith.addf %55, %57 : vector<128x128xf32>
    %c0_38 = arith.constant 0 : index
    %c0_39 = arith.constant 0 : index
    %c0_40 = arith.constant 0 : index
    %59 = vector.load %arg5[%c0_38, %c0_39, %c0_40] : memref<1x128x128xf32, #tpu.memory_space<vmem>>, vector<1x128x128xf32>
    %60 = vector.shape_cast %59 : vector<1x128x128xf32> to vector<128x128xf32>
    %61 = vector.shape_cast %58 : vector<128x128xf32> to vector<1x128x128xf32>
    tpu.vector_store %arg5[%c0_38, %c0_39, %c0_40], %61 {strides = array<i32>} : memref<1x128x128xf32, #tpu.memory_space<vmem>>, vector<1x128x128xf32>,
    %c2_41 = arith.constant 2 : index
    %c0_42 = arith.constant 0 : index
    %62 = vector.load %arg7[%c2_41, %c0_42] : memref<4x128xbf16, #tpu.memory_space<vmem>>, vector<2x128xbf16>
    tpu.vector_store %arg7[%c2_41, %c0_42], %35 {strides = array<i32>} : memref<4x128xbf16, #tpu.memory_space<vmem>>, vector<2x128xbf16>,
    return
  }
  func.func @transform_0(%arg0: i32, %arg1: i32) -> (i32, i32, i32) {
    %c0_i32 = arith.constant 0 : i32
    %c0_i32_0 = arith.constant 0 : i32
    return %arg0, %arg1, %c0_i32 : i32, i32, i32
  }
  func.func @transform_1(%arg0: i32, %arg1: i32) -> (i32, i32, i32) {
    %c0_i32 = arith.constant 0 : i32
    %c0_i32_0 = arith.constant 0 : i32
    %c0_i32_1 = arith.constant 0 : i32
    %c0_i32_2 = arith.constant 0 : i32
    return %c0_i32, %c0_i32_0, %c0_i32_1 : i32, i32, i32
  }
  func.func @transform_2(%arg0: i32, %arg1: i32) -> (i32, i32) {
    %c0_i32 = arith.constant 0 : i32
    %c0_i32_0 = arith.constant 0 : i32
    %c0_i32_1 = arith.constant 0 : i32
    return %c0_i32, %c0_i32_0 : i32, i32
  }
  func.func @transform_3(%arg0: i32, %arg1: i32) -> (i32, i32, i32) {
    %c0_i32 = arith.constant 0 : i32
    %c0_i32_0 = arith.constant 0 : i32
    return %arg0, %arg1, %c0_i32 : i32, i32, i32
  }
}

</mosaic_0001>

<llo_original>
// kernel: causal_conv_net.1
$region0: #{causal_conv_net.1}
  #allocation0 [shape = 'u32[]', space=smem, size = 0x4, offset = 0x4, fixed_abs, tag = 'smem constant byte address 0x4 - core index']
  #allocation1 [shape = 'u32[144,128]{1,0:T(1,128)}', space=vmem, size = 0x12000, scoped, tag = 'internal scratch']
  #allocation2 [shape = 'bf16[144,128]{1,0:T(16,128)(2,1)}', space=vmem, size = 0x9000, scoped, tag = 'scratch operand']
  #allocation3 [shape = 'bf16[4,128]{1,0:T(4,128)(2,1)}', space=vmem, size = 0x400, scoped, tag = 'scratch operand']
  %s0 = inlined_call_operand.hbm [shape: f32[2,256,128], index: 0, kind: input, shape index: {}, may-alias: {0,3}]
  %s1 = inlined_call_operand.vmem [shape: bf16[2,384,256], index: 1, kind: input, shape index: {}]
  %s2 = inlined_call_operand.vmem [shape: f32[2,256], index: 2, kind: input, shape index: {}]
  %s3 = inlined_call_operand.hbm [shape: f32[2,256,128], index: 3, kind: output, shape index: {}, may-alias: {0,3}]
  %s4 = sld [smem:[#allocation0]]
  $region53: #{causal_conv_net.1} parent=0
    _
  %s6 = ssub.s32 1, %s4
  %s7 = scalar_select 0, %s6, %s4
  $region1: #{causal_conv_net.1} parent=0
    #allocation4 [shape = 'u8[131072]{0}', space=vmem, size = 0x20000, scoped, tag = 'input window, operand 0']
    #allocation5 [shape = 's32[2]{0}', space=sflag, size = 0x8, scoped, tag = 'scoped memory for causal_conv_net.1']
    #allocation6 [shape = 's32[2]{0}', space=sflag, size = 0x8, scoped, tag = 'scoped memory for causal_conv_net.1']
    #allocation7 [shape = 'u8[131072]{0}', space=vmem, size = 0x20000, scoped, tag = 'output window, operand 0']
    %8 = vsyncpa [#allocation5], 0
    %s9 = scalar_lea.sflag [#allocation5], 1
    %10 = vsyncpa %s9, 0
    %11 = vsyncpa [#allocation6], 0
    %s12 = scalar_lea.sflag [#allocation6], 1
    %13 = vsyncpa %s12, 0
    loop: start=0, step=1, limit=6
    $region2: #{causal_conv_net.1} parent=1 // loop_pre_header
      _
    $region3: #{causal_conv_net.1} parent=1 // loop_header
      %s15 = sphi 0, %s19
      %p16 = scmp.ge.s32.totalorder %s15, 6
      %s22 = sphi 0, %s34
      %s23 = sphi 0, %s30
      %s24 = sphi 0, %s22
      %s25 = sphi 0, %s23
      %s26 = sphi 0, %s24
      %s27 = sphi 0, %s25
      %s39 = sphi 0, %s41
      %s42 = sphi 0, %s39
      %s43 = sphi 0, %s42
      %s59 = sphi 0, %s43
      %s63 = sphi 0, %s63
      %s65 = sphi 0, %s63
      %s66 = sphi 0, %s65
      %s80 = sphi 0, %s66
      %s84 = sphi 0, %s84
      %s86 = sphi 0, %s84
      %s87 = sphi 0, %s86
      %s101 = sphi 0, %s87
      %s109 = sphi 0, %s111
      %s112 = sphi 0, %s109
      %s113 = sphi 0, %s112
      %s129 = sphi 0, %s113
    $region4: #{causal_conv_net.1} parent=1 // loop_header_branch
      %18 = sbr.rel (%p16) target = $region8
    $region5: #{causal_conv_net.1} parent=1 // loop_body
      %s20 = ssub.s32 %s15, 1
      %s21 = ssub.s32 %s15, 2
      %s28 = sadd.s32 1, %s23
      %p29 = scmp.ge.s32.totalorder %s28, 2
      %s30 = scalar_select %p29, 0, %s28
      %s31 = sadd.s32 1, %s22
      %s32 = scalar_select %p29, %s31, %s22
      %p33 = scmp.ge.s32.totalorder %s32, 2
      %s34 = scalar_select %p33, 0, %s32
      %s35 = ssub.s32 %s22, %s34
      %s36 = ssub.s32 %s23, %s30
      %s37 = sor.u32 %s35, %s36
      %p38 = scmp.eq.s32.totalorder %s37, 0
      %s40 = sadd.s32 %s39, 1
      %s41 = scalar_select %p38, %s39, %s40
      %p44 = pneg %p38
      %p45 = scmp.eq.s32.totalorder %s15, 3
      %p46 = por %p44, %p45
      %p47 = scmp.ne.s32.totalorder %s39, %s42
      %p48 = scmp.eq.s32.totalorder %s15, 0
      %p49 = por %p47, %p48
      %p50 = scmp.ne.s32.totalorder %s39, %s42
      %p51 = scmp.eq.s32.totalorder %s20, 3
      %p52 = por %p50, %p51
      %p53 = scmp.ne.s32.totalorder %s42, %s43
      %p54 = scmp.eq.s32.totalorder %s20, 0
      %p55 = por %p53, %p54
      %p56 = scmp.ne.s32.totalorder %s42, %s43
      %p57 = scmp.eq.s32.totalorder %s21, 3
      %p58 = por %p56, %p57
      %p60 = scmp.ne.s32.totalorder %s43, %s59
      %p61 = scmp.eq.s32.totalorder %s21, 0
      %p62 = por %p60, %p61
      %s64 = sadd.s32 %s63, 1
      %p67 = scmp.eq.s32.totalorder %s15, 3
      %p68 = scmp.ne.s32.totalorder %s63, %s65
      %p69 = scmp.eq.s32.totalorder %s15, 0
      %p70 = por %p68, %p69
      %p71 = scmp.ne.s32.totalorder %s63, %s65
      %p72 = scmp.eq.s32.totalorder %s20, 3
      %p73 = por %p71, %p72
      %p74 = scmp.ne.s32.totalorder %s65, %s66
      %p75 = scmp.eq.s32.totalorder %s20, 0
      %p76 = por %p74, %p75
      %p77 = scmp.ne.s32.totalorder %s65, %s66
      %p78 = scmp.eq.s32.totalorder %s21, 3
      %p79 = por %p77, %p78
      %p81 = scmp.ne.s32.totalorder %s66, %s80
      %p82 = scmp.eq.s32.totalorder %s21, 0
      %p83 = por %p81, %p82
      %s85 = sadd.s32 %s84, 1
      %p88 = scmp.eq.s32.totalorder %s15, 3
      %p89 = scmp.ne.s32.totalorder %s84, %s86
      %p90 = scmp.eq.s32.totalorder %s15, 0
      %p91 = por %p89, %p90
      %p92 = scmp.ne.s32.totalorder %s84, %s86
      %p93 = scmp.eq.s32.totalorder %s20, 3
      %p94 = por %p92, %p93
      %p95 = scmp.ne.s32.totalorder %s86, %s87
      %p96 = scmp.eq.s32.totalorder %s20, 0
      %p97 = por %p95, %p96
      %p98 = scmp.ne.s32.totalorder %s86, %s87
      %p99 = scmp.eq.s32.totalorder %s21, 3
      %p100 = por %p98, %p99
      %p102 = scmp.ne.s32.totalorder %s87, %s101
      %p103 = scmp.eq.s32.totalorder %s21, 0
      %p104 = por %p102, %p103
      %s105 = ssub.s32 %s22, %s34
      %s106 = ssub.s32 %s23, %s30
      %s107 = sor.u32 %s105, %s106
      %p108 = scmp.eq.s32.totalorder %s107, 0
      %s110 = sadd.s32 %s109, 1
      %s111 = scalar_select %p108, %s109, %s110
      %p114 = pneg %p108
      %p115 = scmp.eq.s32.totalorder %s15, 3
      %p116 = por %p114, %p115
      %p117 = scmp.ne.s32.totalorder %s109, %s112
      %p118 = scmp.eq.s32.totalorder %s15, 0
      %p119 = por %p117, %p118
      %p120 = scmp.ne.s32.totalorder %s109, %s112
      %p121 = scmp.eq.s32.totalorder %s20, 3
      %p122 = por %p120, %p121
      %p123 = scmp.ne.s32.totalorder %s112, %s113
      %p124 = scmp.eq.s32.totalorder %s20, 0
      %p125 = por %p123, %p124
      %p126 = scmp.ne.s32.totalorder %s112, %s113
      %p127 = scmp.eq.s32.totalorder %s21, 3
      %p128 = por %p126, %p127
      %p130 = scmp.ne.s32.totalorder %s113, %s129
      %p131 = scmp.eq.s32.totalorder %s21, 0
      %p132 = por %p130, %p131
      %p133 = scmp.le.s32.totalorder 1, %s15
      %p134 = scmp.lt.s32.totalorder %s15, 5
      %p135 = pnand %p133, %p134
      %p136 = pneg %p135
      // Predicated region
      $region9: #{causal_conv_net.1} parent=5 // pred_check
        _
      $region10: #{causal_conv_net.1} parent=5 // pred_check_branch
        %138 = sbr.rel (%p135) target = $region12
      $region11: #{causal_conv_net.1} parent=5 // pred_region
        %s139 = ssub.s32 %s15, 1
        // Predicated region
        $region13: #{causal_conv_net.1} parent=11 // pred_check
          %p140 = pneg %p76
        $region14: #{causal_conv_net.1} parent=11 // pred_check_branch
          %142 = sbr.rel (%p140) target = $region16
        $region15: #{causal_conv_net.1} parent=11 // pred_region
          _
        $region16: #{causal_conv_net.1} parent=11 // pred_fallthru
          _
        // Predicated region
        $region17: #{causal_conv_net.1} parent=11 // pred_check
          %p143 = pneg %p97
        $region18: #{causal_conv_net.1} parent=11 // pred_check_branch
          %145 = sbr.rel (%p143) target = $region20
        $region19: #{causal_conv_net.1} parent=11 // pred_region
          _
        $region20: #{causal_conv_net.1} parent=11 // pred_fallthru
          _
      $region12: #{causal_conv_net.1} parent=5 // pred_fallthru
        _
      %p146 = scmp.lt.s32.totalorder %s15, 4
      // Predicated region
      $region21: #{causal_conv_net.1} parent=5 // pred_check
        %p147 = pneg %p146
      $region22: #{causal_conv_net.1} parent=5 // pred_check_branch
        %149 = sbr.rel (%p147) target = $region24
      $region23: #{causal_conv_net.1} parent=5 // pred_region
        // Predicated region
        $region25: #{causal_conv_net.1} parent=23 // pred_check
          %p150 = pneg %p49
        $region26: #{causal_conv_net.1} parent=23 // pred_check_branch
          %152 = sbr.rel (%p150) target = $region28
        $region27: #{causal_conv_net.1} parent=23 // pred_region
          %s153 = sand.u32 %s39, 1
          %s154 = scalar_lea.sflag [#allocation5], %s153
          %s155 = sand.u32 %s39, 1
          %s156 = smul.addr %s155, 128
          %s157 = scalar_lea.vmem [#allocation4], %s156
          %s158 = smul.u32 16, %s23
          %s160 = ssub.s32 2048, 2048
          %161 = vsyncadd %s154, %s160
          %s162 = smul.addr %s22, 32
          %s163 = sadd.s32 %s158, %s162
          %s164 = smul.addr %s163, 128
          %s165 = scalar_lea.hbm %s0, %s164
          %s166 = sshll.u32 %s157, 4
          %s167 = int_to_ptr.vmem [resolvable:$true] %s166
          %172 = dma.hbm_to_vmem [thread:$0]  %s165, 2048, %s167, %s154, 128, 128, 8
        $region28: #{causal_conv_net.1} parent=23 // pred_fallthru
          _
      $region24: #{causal_conv_net.1} parent=5 // pred_fallthru
        _
      %p173 = scmp.le.s32.totalorder 1, %s15
      %p174 = scmp.lt.s32.totalorder %s15, 5
      %p175 = pnand %p173, %p174
      %p176 = pneg %p175
      // Predicated region
      $region29: #{causal_conv_net.1} parent=5 // pred_check
        _
      $region30: #{causal_conv_net.1} parent=5 // pred_check_branch
        %178 = sbr.rel (%p175) target = $region32
      $region31: #{causal_conv_net.1} parent=5 // pred_region
        %s179 = ssub.s32 %s15, 1
        %s180 = sand.u32 %s42, 1
        %s181 = scalar_lea.sflag [#allocation5], %s180
        %s182 = sand.u32 %s42, 1
        %s183 = smul.addr %s182, 128
        %s184 = scalar_lea.vmem [#allocation4], %s183
        // Predicated region
        $region33: #{causal_conv_net.1} parent=31 // pred_check
          %p185 = pneg %p55
        $region34: #{causal_conv_net.1} parent=31 // pred_check_branch
          %187 = sbr.rel (%p185) target = $region36
        $region35: #{causal_conv_net.1} parent=31 // pred_region
          %188 = dma.done %s181, 2048
        $region36: #{causal_conv_net.1} parent=31 // pred_fallthru
          _
        %s189 = sand.u32 %s42, 1
        %s190 = scalar_lea.sflag [#allocation5], %s189
        %s191 = sand.u32 %s42, 1
        %s192 = smul.addr %s191, 128
        %s193 = scalar_lea.vmem [#allocation4], %s192
        %p194 = pneg %p55
        %p195 = pneg %p52
        %p196 = pneg %p76
        %p197 = pneg %p73
        %p198 = pneg %p97
        %p199 = pneg %p94
        %p200 = pneg %p125
        %p201 = pneg %p122
        %s202 = sand.u32 %s112, 1
        %s203 = scalar_lea.sflag [#allocation6], %s202
        %s204 = sand.u32 %s112, 1
        %s205 = smul.addr %s204, 128
        %s206 = scalar_lea.vmem [#allocation7], %s205
        %s207 = smul.u32 16, %s25
        %s208 = smul.u32 16, %s25
        %p210 = scmp.eq.s32.totalorder %s25, 0
        // Predicated region
        $region37: #{causal_conv_net.1} parent=31 // pred_check
          %p211 = pneg %p210
        $region38: #{causal_conv_net.1} parent=31 // pred_check_branch
          %213 = sbr.rel (%p211) target = $region40
        $region39: #{causal_conv_net.1} parent=31 // pred_region
          %214 = vst [vmem:[#allocation3] sm:$0x3] 0
        $region40: #{causal_conv_net.1} parent=31 // pred_fallthru
          _
        %v215 = vld [vmem:[%s184] sm:$0xff]
        %v216 = vld [vmem:[%s184 + $0x8] sm:$0xff]
        %v217 = vld [vmem:[%s184 + $0x10] sm:$0xff]
        %v218 = vld [vmem:[%s184 + $0x18] sm:$0xff]
        %v219 = vld [vmem:[%s184 + $0x20] sm:$0xff]
        %v220 = vld [vmem:[%s184 + $0x28] sm:$0xff]
        %v221 = vld [vmem:[%s184 + $0x30] sm:$0xff]
        %v222 = vld [vmem:[%s184 + $0x38] sm:$0xff]
        %v223 = vld [vmem:[%s184 + $0x40] sm:$0xff]
        %v224 = vld [vmem:[%s184 + $0x48] sm:$0xff]
        %v225 = vld [vmem:[%s184 + $0x50] sm:$0xff]
        %v226 = vld [vmem:[%s184 + $0x58] sm:$0xff]
        %v227 = vld [vmem:[%s184 + $0x60] sm:$0xff]
        %v228 = vld [vmem:[%s184 + $0x68] sm:$0xff]
        %v229 = vld [vmem:[%s184 + $0x70] sm:$0xff]
        %v230 = vld [vmem:[%s184 + $0x78] sm:$0xff]
        %v231 = vpack.c.bf16 %v216, %v215
        %v232 = vpack.c.bf16 %v218, %v217
        %v233 = vpack.c.bf16 %v220, %v219
        %v234 = vpack.c.bf16 %v222, %v221
        %v235 = vpack.c.bf16 %v224, %v223
        %v236 = vpack.c.bf16 %v226, %v225
        %v237 = vpack.c.bf16 %v228, %v227
        %v238 = vpack.c.bf16 %v230, %v229
        %239 = vst [vmem:[#allocation2 + $0x8] sm:$0xff] %v231
        %240 = vst [vmem:[#allocation2 + $0x10] sm:$0xff] %v232
        %241 = vst [vmem:[#allocation2 + $0x18] sm:$0xff] %v233
        %242 = vst [vmem:[#allocation2 + $0x20] sm:$0xff] %v234
        %243 = vst [vmem:[#allocation2 + $0x28] sm:$0xff] %v235
        %244 = vst [vmem:[#allocation2 + $0x30] sm:$0xff] %v236
        %245 = vst [vmem:[#allocation2 + $0x38] sm:$0xff] %v237
        %246 = vst [vmem:[#allocation2 + $0x40] sm:$0xff] %v238
        %v247 = vld [vmem:[%s2] sm:$0xf]
        %v248 = vld [vmem:[#allocation2 + $0x40] sm:$0x80]
        %v249 = vld [vmem:[#allocation3] sm:$0x1]
        %v252 = vunpack.c.l.s4 1983009808
        %v253 = vunpack.c.0.s8 %v252
        %v254 = vlaneseq
        %v255 = vshrl.u32 %v254, 7
        %v256 = vsub.s32 %v253, %v255
        %v257 = vrot.slane %v249, %v256
        %v258 = vrot.slane %v257, 1
        %260 = vst [vmem:[#allocation2] sm:$0x80] %v258
        %v261 = vld [vmem:[#allocation2] sm:$0x80]
        %v262 = vld [vmem:[#allocation2 + $0x8] sm:$0xff]
        %v263 = vld [vmem:[#allocation2 + $0x10] sm:$0xff]
        %v264 = vld [vmem:[#allocation2 + $0x18] sm:$0xff]
        %v265 = vld [vmem:[#allocation2 + $0x20] sm:$0xff]
        %v266 = vld [vmem:[#allocation2 + $0x28] sm:$0xff]
        %v267 = vld [vmem:[#allocation2 + $0x30] sm:$0xff]
        %v268 = vld [vmem:[#allocation2 + $0x38] sm:$0xff]
        %v269 = vld [vmem:[#allocation2 + $0x40] sm:$0x7f]
        %v270 = vld [vmem:[#allocation2 + $0x40] sm:$0xff]
        %vm271 = vsmask.f32 7424
        %v273 = vshrl.u32 %v261, 16
        %v276 = vshll.u32 %v262, 16
        %v278 = vrot.slane %v276, 1
        %v279 = vsel %vm271, %v273, %v278
        %v280 = vshrl.u32 %v262, 16
        %v282 = vor.u32 %v280, %v278
        %v284 = vshll.u32 %v263, 16
        %v286 = vrot.slane %v284, 1
        %v287 = vsel %vm271, %v282, %v286
        %v288 = vshrl.u32 %v263, 16
        %v290 = vor.u32 %v288, %v286
        %v292 = vshll.u32 %v264, 16
        %v294 = vrot.slane %v292, 1
        %v295 = vsel %vm271, %v290, %v294
        %v296 = vshrl.u32 %v264, 16
        %v298 = vor.u32 %v296, %v294
        %v300 = vshll.u32 %v265, 16
        %v302 = vrot.slane %v300, 1
        %v303 = vsel %vm271, %v298, %v302
        %v304 = vshrl.u32 %v265, 16
        %v306 = vor.u32 %v304, %v302
        %v308 = vshll.u32 %v266, 16
        %v310 = vrot.slane %v308, 1
        %v311 = vsel %vm271, %v306, %v310
        %v312 = vshrl.u32 %v266, 16
        %v314 = vor.u32 %v312, %v310
        %v316 = vshll.u32 %v267, 16
        %v318 = vrot.slane %v316, 1
        %v319 = vsel %vm271, %v314, %v318
        %v320 = vshrl.u32 %v267, 16
        %v322 = vor.u32 %v320, %v318
        %v324 = vshll.u32 %v268, 16
        %v326 = vrot.slane %v324, 1
        %v327 = vsel %vm271, %v322, %v326
        %v328 = vshrl.u32 %v268, 16
        %v330 = vor.u32 %v328, %v326
        %v332 = vshll.u32 %v270, 16
        %v334 = vrot.slane %v332, 1
        %v335 = vsel %vm271, %v330, %v334
        %v336 = vshrl.u32 %v270, 16
        %v338 = vor.u32 %v336, %v334
        %vm347 = vcmask 1046528
        %v348 = vrot.slane %v262, 1
        %v349 = vrot.slane %v263, 1
        %v350 = vsel %vm347, %v348, %v349
        %v351 = vrot.slane %v264, 1
        %v352 = vsel %vm347, %v349, %v351
        %v353 = vrot.slane %v265, 1
        %v354 = vsel %vm347, %v351, %v353
        %v355 = vrot.slane %v266, 1
        %v356 = vsel %vm347, %v353, %v355
        %v357 = vrot.slane %v267, 1
        %v358 = vsel %vm347, %v355, %v357
        %v359 = vrot.slane %v268, 1
        %v360 = vsel %vm347, %v357, %v359
        %v361 = vrot.slane %v270, 1
        %v362 = vsel %vm347, %v359, %v361
        %v363 = vld [vmem:[%s1] sm:$0xff]
        %v364 = vld [vmem:[%s1 + $0x8] sm:$0xff]
        %v365 = vld [vmem:[%s1 + $0x10] sm:$0xff]
        %v366 = vld [vmem:[%s1 + $0x18] sm:$0xff]
        %v367 = vld [vmem:[%s1 + $0x20] sm:$0xff]
        %v368 = vld [vmem:[%s1 + $0x28] sm:$0xff]
        %v369 = vld [vmem:[%s1 + $0x30] sm:$0xff]
        %v370 = vld [vmem:[%s1 + $0x38] sm:$0xff]
        %v371 = vld [vmem:[%s1 + $0x40] sm:$0xff]
        %v372 = vld [vmem:[%s1 + $0x48] sm:$0xff]
        %v373 = vld [vmem:[%s1 + $0x50] sm:$0xff]
        %v374 = vld [vmem:[%s1 + $0x58] sm:$0xff]
        %v375 = vld [vmem:[%s1 + $0x60] sm:$0xff]
        %v376 = vld [vmem:[%s1 + $0x68] sm:$0xff]
        %v377 = vld [vmem:[%s1 + $0x70] sm:$0xff]
        %v378 = vld [vmem:[%s1 + $0x78] sm:$0xff]
        %v379 = vld [vmem:[%s1 + $0x80] sm:$0xff]
        %v380 = vld [vmem:[%s1 + $0x88] sm:$0xff]
        %v381 = vld [vmem:[%s1 + $0x90] sm:$0xff]
        %v382 = vld [vmem:[%s1 + $0x98] sm:$0xff]
        %v383 = vld [vmem:[%s1 + $0xa0] sm:$0xff]
        %v384 = vld [vmem:[%s1 + $0xa8] sm:$0xff]
        %v385 = vld [vmem:[%s1 + $0xb0] sm:$0xff]
        %v386 = vld [vmem:[%s1 + $0xb8] sm:$0xff]
        %v387 = vld [vmem:[%s1 + $0xc0] sm:$0xff]
        %v388 = vld [vmem:[%s1 + $0xc8] sm:$0xff]
        %v389 = vld [vmem:[%s1 + $0xd0] sm:$0xff]
        %v390 = vld [vmem:[%s1 + $0xd8] sm:$0xff]
        %v391 = vld [vmem:[%s1 + $0xe0] sm:$0xff]
        %v392 = vld [vmem:[%s1 + $0xe8] sm:$0xff]
        %v393 = vld [vmem:[%s1 + $0xf0] sm:$0xff]
        %v394 = vld [vmem:[%s1 + $0xf8] sm:$0xff]
        %v395 = vld [vmem:[%s1 + $0x100] sm:$0xff]
        %v396 = vld [vmem:[%s1 + $0x108] sm:$0xff]
        %v397 = vld [vmem:[%s1 + $0x110] sm:$0xff]
        %v398 = vld [vmem:[%s1 + $0x118] sm:$0xff]
        %v399 = vld [vmem:[%s1 + $0x120] sm:$0xff]
        %v400 = vld [vmem:[%s1 + $0x128] sm:$0xff]
        %v401 = vld [vmem:[%s1 + $0x130] sm:$0xff]
        %v402 = vld [vmem:[%s1 + $0x138] sm:$0xff]
        %v403 = vld [vmem:[%s1 + $0x140] sm:$0xff]
        %v404 = vld [vmem:[%s1 + $0x148] sm:$0xff]
        %v405 = vld [vmem:[%s1 + $0x150] sm:$0xff]
        %v406 = vld [vmem:[%s1 + $0x158] sm:$0xff]
        %v407 = vld [vmem:[%s1 + $0x160] sm:$0xff]
        %v408 = vld [vmem:[%s1 + $0x168] sm:$0xff]
        %v409 = vld [vmem:[%s1 + $0x170] sm:$0xff]
        %v410 = vld [vmem:[%s1 + $0x178] sm:$0xff]
        %v412 = vlaneseq
        %v413 = vshrl.u32 %v412, 7
        %v414 = vsub.s32 0, %v413
        %v415 = vrot.slane %v247, %v414
        %v416 = vlaneseq
        %v417 = vshrl.u32 %v416, 7
        %v418 = vsub.s32 2, %v417
        %v419 = vrot.slane %v247, %v418
        %v422 = vlaneseq
        %v423 = vshrl.u32 %v422, 7
        %v424 = vsub.s32 0, %v423
        %v425 = vrot.slane %v415, %v424
        %v426 = vlaneseq
        %v427 = vshrl.u32 %v426, 7
        %v428 = vsub.s32 0, %v427
        %v429 = vrot.slane %v419, %v428
        %vm432 = vcmask 1040384
        %v433 = vrot.slane %v261, 7
        %v434 = vrot.slane %v262, 7
        %v435 = vsel %vm432, %v433, %v434
        %v436 = vrot.slane %v279, 7
        %v437 = vrot.slane %v287, 7
        %v438 = vsel %vm432, %v436, %v437
        %v439 = vrot.slane %v348, 7
        %v440 = vrot.slane %v350, 7
        %v441 = vsel %vm432, %v439, %v440
        %v442 = vrot.slane %v263, 7
        %v443 = vsel %vm432, %v434, %v442
        %v444 = vrot.slane %v295, 7
        %v445 = vsel %vm432, %v437, %v444
        %v446 = vrot.slane %v352, 7
        %v447 = vsel %vm432, %v440, %v446
        %v448 = vrot.slane %v264, 7
        %v449 = vsel %vm432, %v442, %v448
        %v450 = vrot.slane %v303, 7
        %v451 = vsel %vm432, %v444, %v450
        %v452 = vrot.slane %v354, 7
        %v453 = vsel %vm432, %v446, %v452
        %v454 = vrot.slane %v265, 7
        %v455 = vsel %vm432, %v448, %v454
        %v456 = vrot.slane %v311, 7
        %v457 = vsel %vm432, %v450, %v456
        %v458 = vrot.slane %v356, 7
        %v459 = vsel %vm432, %v452, %v458
        %v460 = vrot.slane %v266, 7
        %v461 = vsel %vm432, %v454, %v460
        %v462 = vrot.slane %v319, 7
        %v463 = vsel %vm432, %v456, %v462
        %v464 = vrot.slane %v358, 7
        %v465 = vsel %vm432, %v458, %v464
        %v466 = vrot.slane %v267, 7
        %v467 = vsel %vm432, %v460, %v466
        %v468 = vrot.slane %v327, 7
        %v469 = vsel %vm432, %v462, %v468
        %v470 = vrot.slane %v360, 7
        %v471 = vsel %vm432, %v464, %v470
        %v472 = vrot.slane %v268, 7
        %v473 = vsel %vm432, %v466, %v472
        %v474 = vrot.slane %v335, 7
        %v475 = vsel %vm432, %v468, %v474
        %v476 = vrot.slane %v362, 7
        %v477 = vsel %vm432, %v470, %v476
        %v478 = vrot.slane %v269, 7
        %v479 = vsel %vm432, %v472, %v478
        %v480 = vrot.slane %v338, 7
        %v481 = vsel %vm432, %v474, %v480
        %v482 = vrot.slane %v361, 7
        %v483 = vsel %vm432, %v476, %v482
        %v556 = vunpack.c.l.b16 %v363
        %v557 = vunpack.c.h.b16 %v363
        %v558 = vunpack.c.l.b16 %v364
        %v559 = vunpack.c.h.b16 %v364
        %v560 = vunpack.c.l.b16 %v365
        %v561 = vunpack.c.h.b16 %v365
        %v562 = vunpack.c.l.b16 %v366
        %v563 = vunpack.c.h.b16 %v366
        %v564 = vunpack.c.l.b16 %v367
        %v565 = vunpack.c.h.b16 %v367
        %v566 = vunpack.c.l.b16 %v368
        %v567 = vunpack.c.h.b16 %v368
        %v568 = vunpack.c.l.b16 %v369
        %v569 = vunpack.c.h.b16 %v369
        %v570 = vunpack.c.l.b16 %v370
        %v571 = vunpack.c.h.b16 %v370
        %v572 = vunpack.c.l.b16 %v371
        %v573 = vunpack.c.h.b16 %v371
        %v574 = vunpack.c.l.b16 %v372
        %v575 = vunpack.c.h.b16 %v372
        %v576 = vunpack.c.l.b16 %v373
        %v577 = vunpack.c.h.b16 %v373
        %v578 = vunpack.c.l.b16 %v374
        %v579 = vunpack.c.h.b16 %v374
        %v580 = vunpack.c.l.b16 %v375
        %v581 = vunpack.c.h.b16 %v375
        %v582 = vunpack.c.l.b16 %v376
        %v583 = vunpack.c.h.b16 %v376
        %v584 = vunpack.c.l.b16 %v377
        %v585 = vunpack.c.h.b16 %v377
        %v586 = vunpack.c.l.b16 %v378
        %v587 = vunpack.c.h.b16 %v378
        %v588 = vunpack.c.l.b16 %v379
        %v589 = vunpack.c.h.b16 %v379
        %v590 = vunpack.c.l.b16 %v380
        %v591 = vunpack.c.h.b16 %v380
        %v592 = vunpack.c.l.b16 %v381
        %v593 = vunpack.c.h.b16 %v381
        %v594 = vunpack.c.l.b16 %v382
        %v595 = vunpack.c.h.b16 %v382
        %v596 = vunpack.c.l.b16 %v383
        %v597 = vunpack.c.h.b16 %v383
        %v598 = vunpack.c.l.b16 %v384
        %v599 = vunpack.c.h.b16 %v384
        %v600 = vunpack.c.l.b16 %v385
        %v601 = vunpack.c.h.b16 %v385
        %v602 = vunpack.c.l.b16 %v386
        %v603 = vunpack.c.h.b16 %v386
        %v604 = vunpack.c.l.b16 %v387
        %v605 = vunpack.c.h.b16 %v387
        %v606 = vunpack.c.l.b16 %v388
        %v607 = vunpack.c.h.b16 %v388
        %v608 = vunpack.c.l.b16 %v389
        %v609 = vunpack.c.h.b16 %v389
        %v610 = vunpack.c.l.b16 %v390
        %v611 = vunpack.c.h.b16 %v390
        %v612 = vunpack.c.l.b16 %v391
        %v613 = vunpack.c.h.b16 %v391
        %v614 = vunpack.c.l.b16 %v392
        %v615 = vunpack.c.h.b16 %v392
        %v616 = vunpack.c.l.b16 %v393
        %v617 = vunpack.c.h.b16 %v393
        %v618 = vunpack.c.l.b16 %v394
        %v619 = vunpack.c.h.b16 %v394
        %v620 = vunpack.c.l.b16 %v395
        %v621 = vunpack.c.h.b16 %v395
        %v622 = vunpack.c.l.b16 %v396
        %v623 = vunpack.c.h.b16 %v396
        %v624 = vunpack.c.l.b16 %v397
        %v625 = vunpack.c.h.b16 %v397
        %v626 = vunpack.c.l.b16 %v398
        %v627 = vunpack.c.h.b16 %v398
        %v628 = vunpack.c.l.b16 %v399
        %v629 = vunpack.c.h.b16 %v399
        %v630 = vunpack.c.l.b16 %v400
        %v631 = vunpack.c.h.b16 %v400
        %v632 = vunpack.c.l.b16 %v401
        %v633 = vunpack.c.h.b16 %v401
        %v634 = vunpack.c.l.b16 %v402
        %v635 = vunpack.c.h.b16 %v402
        %v636 = vunpack.c.l.b16 %v403
        %v637 = vunpack.c.h.b16 %v403
        %v638 = vunpack.c.l.b16 %v404
        %v639 = vunpack.c.h.b16 %v404
        %v640 = vunpack.c.l.b16 %v405
        %v641 = vunpack.c.h.b16 %v405
        %v642 = vunpack.c.l.b16 %v406
        %v643 = vunpack.c.h.b16 %v406
        %v644 = vunpack.c.l.b16 %v407
        %v645 = vunpack.c.h.b16 %v407
        %v646 = vunpack.c.l.b16 %v408
        %v647 = vunpack.c.h.b16 %v408
        %v648 = vunpack.c.l.b16 %v409
        %v649 = vunpack.c.h.b16 %v409
        %v650 = vunpack.c.l.b16 %v410
        %v651 = vunpack.c.h.b16 %v410
        %v652 = vpack.c.b16 %v558, %v556
        %v653 = vpack.c.b16 %v559, %v557
        %v654 = vpack.c.b16 %v562, %v560
        %v655 = vpack.c.b16 %v563, %v561
        %v656 = vpack.c.b16 %v566, %v564
        %v657 = vpack.c.b16 %v567, %v565
        %v658 = vpack.c.b16 %v570, %v568
        %v659 = vpack.c.b16 %v571, %v569
        %v660 = vpack.c.b16 %v574, %v572
        %v661 = vpack.c.b16 %v575, %v573
        %v662 = vpack.c.b16 %v578, %v576
        %v663 = vpack.c.b16 %v579, %v577
        %v664 = vpack.c.b16 %v582, %v580
        %v665 = vpack.c.b16 %v583, %v581
        %v666 = vpack.c.b16 %v586, %v584
        %v667 = vpack.c.b16 %v587, %v585
        %v668 = vpack.c.b16 %v590, %v588
        %v669 = vpack.c.b16 %v591, %v589
        %v670 = vpack.c.b16 %v594, %v592
        %v671 = vpack.c.b16 %v595, %v593
        %v672 = vpack.c.b16 %v598, %v596
        %v673 = vpack.c.b16 %v599, %v597
        %v674 = vpack.c.b16 %v602, %v600
        %v675 = vpack.c.b16 %v603, %v601
        %v676 = vpack.c.b16 %v606, %v604
        %v677 = vpack.c.b16 %v607, %v605
        %v678 = vpack.c.b16 %v610, %v608
        %v679 = vpack.c.b16 %v611, %v609
        %v680 = vpack.c.b16 %v614, %v612
        %v681 = vpack.c.b16 %v615, %v613
        %v682 = vpack.c.b16 %v618, %v616
        %v683 = vpack.c.b16 %v619, %v617
        %v684 = vpack.c.b16 %v622, %v620
        %v685 = vpack.c.b16 %v623, %v621
        %v686 = vpack.c.b16 %v626, %v624
        %v687 = vpack.c.b16 %v627, %v625
        %v688 = vpack.c.b16 %v630, %v628
        %v689 = vpack.c.b16 %v631, %v629
        %v690 = vpack.c.b16 %v634, %v632
        %v691 = vpack.c.b16 %v635, %v633
        %v692 = vpack.c.b16 %v638, %v636
        %v693 = vpack.c.b16 %v639, %v637
        %v694 = vpack.c.b16 %v642, %v640
        %v695 = vpack.c.b16 %v643, %v641
        %v696 = vpack.c.b16 %v646, %v644
        %v697 = vpack.c.b16 %v647, %v645
        %v698 = vpack.c.b16 %v650, %v648
        %v699 = vpack.c.b16 %v651, %v649
        %748 = vmatprep.subr.bf16.mxu0 %v653
        %749 = vmatpush1.bf16.msra.mxu0 %v652
        %750 = vmatprep.subr.bf16.mxu0 %v655
        %751 = vmatpush1.bf16.msra.mxu0 %v654
        %752 = vmatprep.subr.bf16.mxu0 %v657
        %753 = vmatpush1.bf16.msra.mxu0 %v656
        %754 = vmatprep.subr.bf16.mxu0 %v659
        %755 = vmatpush1.bf16.msra.mxu0 %v658
        %756 = vmatprep.subr.bf16.mxu0 %v661
        %757 = vmatpush1.bf16.msra.mxu0 %v660
        %758 = vmatprep.subr.bf16.mxu0 %v663
        %759 = vmatpush1.bf16.msra.mxu0 %v662
        %760 = vmatprep.subr.bf16.mxu0 %v665
        %761 = vmatpush1.bf16.msra.mxu0 %v664
        %762 = vmatprep.subr.bf16.mxu0 %v667
        %763 = vmatpush1.bf16.msra.mxu0 %v666
        %764 = vmatprep.subr.bf16.mxu0 %v669
        %765 = vmatpush1.bf16.msra.mxu0 %v668
        %766 = vmatprep.subr.bf16.mxu0 %v671
        %767 = vmatpush1.bf16.msra.mxu0 %v670
        %768 = vmatprep.subr.bf16.mxu0 %v673
        %769 = vmatpush1.bf16.msra.mxu0 %v672
        %770 = vmatprep.subr.bf16.mxu0 %v675
        %771 = vmatpush1.bf16.msra.mxu0 %v674
        %772 = vmatprep.subr.bf16.mxu0 %v677
        %773 = vmatpush1.bf16.msra.mxu0 %v676
        %774 = vmatprep.subr.bf16.mxu0 %v679
        %775 = vmatpush1.bf16.msra.mxu0 %v678
        %776 = vmatprep.subr.bf16.mxu0 %v681
        %777 = vmatpush1.bf16.msra.mxu0 %v680
        %778 = vmatprep.subr.bf16.mxu0 %v683
        %779 = vmatpush1.bf16.msra.mxu0 %v682
        %780 = vmatprep.mubr.bf16.mxu0 %v438
        %781 = vmatmul.mubr.bf16.gmra.mrb[0].mxu0 %v435
        %v782 = vpop.f32.mrb[0].mxu0
        %v783 = vadd.f32 %v425, %v782
        %v784 = vpop.f32.mrb[0].mxu0
        %v785 = vadd.f32 %v429, %v784
        %v786 = vpop.f32.mrb[0].mxu0
        %v787 = vadd.f32 %v425, %v786
        %v788 = vpop.f32.mrb[0].mxu0
        %v789 = vadd.f32 %v429, %v788
        %790 = vmatprep.mubr.bf16.mxu0 %v445
        %791 = vmatmul.mubr.bf16.gmra.mrb[0].mxu0 %v443
        %v792 = vpop.f32.mrb[0].mxu0
        %v793 = vadd.f32 %v425, %v792
        %v794 = vpop.f32.mrb[0].mxu0
        %v795 = vadd.f32 %v429, %v794
        %v796 = vpop.f32.mrb[0].mxu0
        %v797 = vadd.f32 %v425, %v796
        %v798 = vpop.f32.mrb[0].mxu0
        %v799 = vadd.f32 %v429, %v798
        %800 = vmatprep.mubr.bf16.mxu0 %v451
        %801 = vmatmul.mubr.bf16.gmra.mrb[0].mxu0 %v449
        %v802 = vpop.f32.mrb[0].mxu0
        %v803 = vadd.f32 %v425, %v802
        %v804 = vpop.f32.mrb[0].mxu0
        %v805 = vadd.f32 %v429, %v804
        %v806 = vpop.f32.mrb[0].mxu0
        %v807 = vadd.f32 %v425, %v806
        %v808 = vpop.f32.mrb[0].mxu0
        %v809 = vadd.f32 %v429, %v808
        %810 = vmatprep.mubr.bf16.mxu0 %v457
        %811 = vmatmul.mubr.bf16.gmra.mrb[0].mxu0 %v455
        %v812 = vpop.f32.mrb[0].mxu0
        %v813 = vadd.f32 %v425, %v812
        %v814 = vpop.f32.mrb[0].mxu0
        %v815 = vadd.f32 %v429, %v814
        %v816 = vpop.f32.mrb[0].mxu0
        %v817 = vadd.f32 %v425, %v816
        %v818 = vpop.f32.mrb[0].mxu0
        %v819 = vadd.f32 %v429, %v818
        %820 = vmatprep.mubr.bf16.mxu0 %v463
        %821 = vmatmul.mubr.bf16.gmra.mrb[0].mxu0 %v461
        %v822 = vpop.f32.mrb[0].mxu0
        %v823 = vadd.f32 %v425, %v822
        %v824 = vpop.f32.mrb[0].mxu0
        %v825 = vadd.f32 %v429, %v824
        %v826 = vpop.f32.mrb[0].mxu0
        %v827 = vadd.f32 %v425, %v826
        %v828 = vpop.f32.mrb[0].mxu0
        %v829 = vadd.f32 %v429, %v828
        %830 = vmatprep.mubr.bf16.mxu0 %v469
        %831 = vmatmul.mubr.bf16.gmra.mrb[0].mxu0 %v467
        %v832 = vpop.f32.mrb[0].mxu0
        %v833 = vadd.f32 %v425, %v832
        %v834 = vpop.f32.mrb[0].mxu0
        %v835 = vadd.f32 %v429, %v834
        %v836 = vpop.f32.mrb[0].mxu0
        %v837 = vadd.f32 %v425, %v836
        %v838 = vpop.f32.mrb[0].mxu0
        %v839 = vadd.f32 %v429, %v838
        %840 = vmatprep.mubr.bf16.mxu0 %v475
        %841 = vmatmul.mubr.bf16.gmra.mrb[0].mxu0 %v473
        %v842 = vpop.f32.mrb[0].mxu0
        %v843 = vadd.f32 %v425, %v842
        %v844 = vpop.f32.mrb[0].mxu0
        %v845 = vadd.f32 %v429, %v844
        %v846 = vpop.f32.mrb[0].mxu0
        %v847 = vadd.f32 %v425, %v846
        %v848 = vpop.f32.mrb[0].mxu0
        %v849 = vadd.f32 %v429, %v848
        %850 = vmatprep.mubr.bf16.mxu0 %v481
        %851 = vmatmul.mubr.bf16.gmra.mrb[0].mxu0 %v479
        %v852 = vpop.f32.mrb[0].mxu0
        %v853 = vadd.f32 %v425, %v852
        %v854 = vpop.f32.mrb[0].mxu0
        %v855 = vadd.f32 %v429, %v854
        %v856 = vpop.f32.mrb[0].mxu0
        %v857 = vadd.f32 %v425, %v856
        %v858 = vpop.f32.mrb[0].mxu0
        %v859 = vadd.f32 %v429, %v858
        %860 = vdwg.mxu0
        %861 = vmatprep.subr.bf16.mxu0 %v685
        %862 = vmatpush1.bf16.msra.mxu0 %v684
        %863 = vmatprep.subr.bf16.mxu0 %v687
        %864 = vmatpush1.bf16.msra.mxu0 %v686
        %865 = vmatprep.subr.bf16.mxu0 %v689
        %866 = vmatpush1.bf16.msra.mxu0 %v688
        %867 = vmatprep.subr.bf16.mxu0 %v691
        %868 = vmatpush1.bf16.msra.mxu0 %v690
        %869 = vmatprep.subr.bf16.mxu0 %v693
        %870 = vmatpush1.bf16.msra.mxu0 %v692
        %871 = vmatprep.subr.bf16.mxu0 %v695
        %872 = vmatpush1.bf16.msra.mxu0 %v694
        %873 = vmatprep.subr.bf16.mxu0 %v697
        %874 = vmatpush1.bf16.msra.mxu0 %v696
        %875 = vmatprep.subr.bf16.mxu0 %v699
        %876 = vmatpush1.bf16.msra.mxu0 %v698
        %877 = vmatprep.subr.bf16.mxu0 0
        %878 = vmatpush1.bf16.msra.mxu0 0
        %879 = vmatprep.subr.bf16.mxu0 0
        %880 = vmatpush1.bf16.msra.mxu0 0
        %881 = vmatprep.subr.bf16.mxu0 0
        %882 = vmatpush1.bf16.msra.mxu0 0
        %883 = vmatprep.subr.bf16.mxu0 0
        %884 = vmatpush1.bf16.msra.mxu0 0
        %885 = vmatprep.subr.bf16.mxu0 0
        %886 = vmatpush1.bf16.msra.mxu0 0
        %887 = vmatprep.subr.bf16.mxu0 0
        %888 = vmatpush1.bf16.msra.mxu0 0
        %889 = vmatprep.subr.bf16.mxu0 0
        %890 = vmatpush1.bf16.msra.mxu0 0
        %891 = vmatprep.subr.bf16.mxu0 0
        %892 = vmatpush1.bf16.msra.mxu0 0
        %893 = vmatprep.mubr.bf16.mxu0 0
        %894 = vmatmul.mubr.bf16.gmra.mrb[0].mxu0 %v441
        %v895 = vpop.f32.mrb[0].mxu0
        %v896 = vadd.f32 %v783, %v895
        %v897 = vpop.f32.mrb[0].mxu0
        %v898 = vadd.f32 %v785, %v897
        %v899 = vpop.f32.mrb[0].mxu0
        %v900 = vadd.f32 %v787, %v899
        %v901 = vpop.f32.mrb[0].mxu0
        %v902 = vadd.f32 %v789, %v901
        %903 = vmatprep.mubr.bf16.mxu0 0
        %904 = vmatmul.mubr.bf16.gmra.mrb[0].mxu0 %v447
        %v905 = vpop.f32.mrb[0].mxu0
        %v906 = vadd.f32 %v793, %v905
        %v907 = vpop.f32.mrb[0].mxu0
        %v908 = vadd.f32 %v795, %v907
        %v909 = vpop.f32.mrb[0].mxu0
        %v910 = vadd.f32 %v797, %v909
        %v911 = vpop.f32.mrb[0].mxu0
        %v912 = vadd.f32 %v799, %v911
        %913 = vmatprep.mubr.bf16.mxu0 0
        %914 = vmatmul.mubr.bf16.gmra.mrb[0].mxu0 %v453
        %v915 = vpop.f32.mrb[0].mxu0
        %v916 = vadd.f32 %v803, %v915
        %v917 = vpop.f32.mrb[0].mxu0
        %v918 = vadd.f32 %v805, %v917
        %v919 = vpop.f32.mrb[0].mxu0
        %v920 = vadd.f32 %v807, %v919
        %v921 = vpop.f32.mrb[0].mxu0
        %v922 = vadd.f32 %v809, %v921
        %923 = vmatprep.mubr.bf16.mxu0 0
        %924 = vmatmul.mubr.bf16.gmra.mrb[0].mxu0 %v459
        %v925 = vpop.f32.mrb[0].mxu0
        %v926 = vadd.f32 %v813, %v925
        %v927 = vpop.f32.mrb[0].mxu0
        %v928 = vadd.f32 %v815, %v927
        %v929 = vpop.f32.mrb[0].mxu0
        %v930 = vadd.f32 %v817, %v929
        %v931 = vpop.f32.mrb[0].mxu0
        %v932 = vadd.f32 %v819, %v931
        %933 = vmatprep.mubr.bf16.mxu0 0
        %934 = vmatmul.mubr.bf16.gmra.mrb[0].mxu0 %v465
        %v935 = vpop.f32.mrb[0].mxu0
        %v936 = vadd.f32 %v823, %v935
        %v937 = vpop.f32.mrb[0].mxu0
        %v938 = vadd.f32 %v825, %v937
        %v939 = vpop.f32.mrb[0].mxu0
        %v940 = vadd.f32 %v827, %v939
        %v941 = vpop.f32.mrb[0].mxu0
        %v942 = vadd.f32 %v829, %v941
        %943 = vmatprep.mubr.bf16.mxu0 0
        %944 = vmatmul.mubr.bf16.gmra.mrb[0].mxu0 %v471
        %v945 = vpop.f32.mrb[0].mxu0
        %v946 = vadd.f32 %v833, %v945
        %v947 = vpop.f32.mrb[0].mxu0
        %v948 = vadd.f32 %v835, %v947
        %v949 = vpop.f32.mrb[0].mxu0
        %v950 = vadd.f32 %v837, %v949
        %v951 = vpop.f32.mrb[0].mxu0
        %v952 = vadd.f32 %v839, %v951
        %953 = vmatprep.mubr.bf16.mxu0 0
        %954 = vmatmul.mubr.bf16.gmra.mrb[0].mxu0 %v477
        %v955 = vpop.f32.mrb[0].mxu0
        %v956 = vadd.f32 %v843, %v955
        %v957 = vpop.f32.mrb[0].mxu0
        %v958 = vadd.f32 %v845, %v957
        %v959 = vpop.f32.mrb[0].mxu0
        %v960 = vadd.f32 %v847, %v959
        %v961 = vpop.f32.mrb[0].mxu0
        %v962 = vadd.f32 %v849, %v961
        %963 = vmatprep.mubr.bf16.mxu0 0
        %964 = vmatmul.mubr.bf16.gmra.mrb[0].mxu0 %v483
        %v965 = vpop.f32.mrb[0].mxu0
        %v966 = vadd.f32 %v853, %v965
        %v967 = vpop.f32.mrb[0].mxu0
        %v968 = vadd.f32 %v855, %v967
        %v969 = vpop.f32.mrb[0].mxu0
        %v970 = vadd.f32 %v857, %v969
        %v971 = vpop.f32.mrb[0].mxu0
        %v972 = vadd.f32 %v859, %v971
        %973 = vdwg.mxu0
        %v974 = vxor.u32 %v898, 2147483648
        %v975 = vxor.u32 %v902, 2147483648
        %v976 = vxor.u32 %v908, 2147483648
        %v977 = vxor.u32 %v912, 2147483648
        %v978 = vxor.u32 %v918, 2147483648
        %v979 = vxor.u32 %v922, 2147483648
        %v980 = vxor.u32 %v928, 2147483648
        %v981 = vxor.u32 %v932, 2147483648
        %v982 = vxor.u32 %v938, 2147483648
        %v983 = vxor.u32 %v942, 2147483648
        %v984 = vxor.u32 %v948, 2147483648
        %v985 = vxor.u32 %v952, 2147483648
        %v986 = vxor.u32 %v958, 2147483648
        %v987 = vxor.u32 %v962, 2147483648
        %v988 = vxor.u32 %v968, 2147483648
        %v989 = vxor.u32 %v972, 2147483648
        %v990 = vmul.f32 %v974, 1.442695
        %v991 = vpow.pop %v990
        %v992 = vmul.f32 %v975, 1.442695
        %v993 = vpow.pop %v992
        %v994 = vmul.f32 %v976, 1.442695
        %v995 = vpow.pop %v994
        %v996 = vmul.f32 %v977, 1.442695
        %v997 = vpow.pop %v996
        %v998 = vmul.f32 %v978, 1.442695
        %v999 = vpow.pop %v998
        %v1000 = vmul.f32 %v979, 1.442695
        %v1001 = vpow.pop %v1000
        %v1002 = vmul.f32 %v980, 1.442695
        %v1003 = vpow.pop %v1002
        %v1004 = vmul.f32 %v981, 1.442695
        %v1005 = vpow.pop %v1004
        %v1006 = vmul.f32 %v982, 1.442695
        %v1007 = vpow.pop %v1006
        %v1008 = vmul.f32 %v983, 1.442695
        %v1009 = vpow.pop %v1008
        %v1010 = vmul.f32 %v984, 1.442695
        %v1011 = vpow.pop %v1010
        %v1012 = vmul.f32 %v985, 1.442695
        %v1013 = vpow.pop %v1012
        %v1014 = vmul.f32 %v986, 1.442695
        %v1015 = vpow.pop %v1014
        %v1016 = vmul.f32 %v987, 1.442695
        %v1017 = vpow.pop %v1016
        %v1018 = vmul.f32 %v988, 1.442695
        %v1019 = vpow.pop %v1018
        %v1020 = vmul.f32 %v989, 1.442695
        %v1021 = vpow.pop %v1020
        %v1022 = vadd.f32 %v991, 1.0
        %v1023 = vadd.f32 %v993, 1.0
        %v1024 = vadd.f32 %v995, 1.0
        %v1025 = vadd.f32 %v997, 1.0
        %v1026 = vadd.f32 %v999, 1.0
        %v1027 = vadd.f32 %v1001, 1.0
        %v1028 = vadd.f32 %v1003, 1.0
        %v1029 = vadd.f32 %v1005, 1.0
        %v1030 = vadd.f32 %v1007, 1.0
        %v1031 = vadd.f32 %v1009, 1.0
        %v1032 = vadd.f32 %v1011, 1.0
        %v1033 = vadd.f32 %v1013, 1.0
        %v1034 = vadd.f32 %v1015, 1.0
        %v1035 = vadd.f32 %v1017, 1.0
        %v1036 = vadd.f32 %v1019, 1.0
        %v1037 = vadd.f32 %v1021, 1.0
        %v1038 = vrcp.pop %v1022
        %v1039 = vmul.f32 1.0, %v1038
        %v1040 = vrcp.pop %v1023
        %v1041 = vmul.f32 1.0, %v1040
        %v1042 = vrcp.pop %v1024
        %v1043 = vmul.f32 1.0, %v1042
        %v1044 = vrcp.pop %v1025
        %v1045 = vmul.f32 1.0, %v1044
        %v1046 = vrcp.pop %v1026
        %v1047 = vmul.f32 1.0, %v1046
        %v1048 = vrcp.pop %v1027
        %v1049 = vmul.f32 1.0, %v1048
        %v1050 = vrcp.pop %v1028
        %v1051 = vmul.f32 1.0, %v1050
        %v1052 = vrcp.pop %v1029
        %v1053 = vmul.f32 1.0, %v1052
        %v1054 = vrcp.pop %v1030
        %v1055 = vmul.f32 1.0, %v1054
        %v1056 = vrcp.pop %v1031
        %v1057 = vmul.f32 1.0, %v1056
        %v1058 = vrcp.pop %v1032
        %v1059 = vmul.f32 1.0, %v1058
        %v1060 = vrcp.pop %v1033
        %v1061 = vmul.f32 1.0, %v1060
        %v1062 = vrcp.pop %v1034
        %v1063 = vmul.f32 1.0, %v1062
        %v1064 = vrcp.pop %v1035
        %v1065 = vmul.f32 1.0, %v1064
        %v1066 = vrcp.pop %v1036
        %v1067 = vmul.f32 1.0, %v1066
        %v1068 = vrcp.pop %v1037
        %v1069 = vmul.f32 1.0, %v1068
        %v1070 = vmul.f32 %v896, %v1039
        %v1071 = vmul.f32 %v900, %v1041
        %v1072 = vmul.f32 %v906, %v1043
        %v1073 = vmul.f32 %v910, %v1045
        %v1074 = vmul.f32 %v916, %v1047
        %v1075 = vmul.f32 %v920, %v1049
        %v1076 = vmul.f32 %v926, %v1051
        %v1077 = vmul.f32 %v930, %v1053
        %v1078 = vmul.f32 %v936, %v1055
        %v1079 = vmul.f32 %v940, %v1057
        %v1080 = vmul.f32 %v946, %v1059
        %v1081 = vmul.f32 %v950, %v1061
        %v1082 = vmul.f32 %v956, %v1063
        %v1083 = vmul.f32 %v960, %v1065
        %v1084 = vmul.f32 %v966, %v1067
        %v1085 = vmul.f32 %v970, %v1069
        %vm1086 = vcmask 1043456
        %v1087 = vrot.slane %v348, 4
        %v1088 = vrot.slane %v350, 4
        %v1089 = vsel %vm1086, %v1087, %v1088
        %v1090 = vrot.slane %v352, 4
        %v1091 = vsel %vm1086, %v1088, %v1090
        %v1092 = vrot.slane %v354, 4
        %v1093 = vsel %vm1086, %v1090, %v1092
        %v1094 = vrot.slane %v356, 4
        %v1095 = vsel %vm1086, %v1092, %v1094
        %v1096 = vrot.slane %v358, 4
        %v1097 = vsel %vm1086, %v1094, %v1096
        %v1098 = vrot.slane %v360, 4
        %v1099 = vsel %vm1086, %v1096, %v1098
        %v1100 = vrot.slane %v362, 4
        %v1101 = vsel %vm1086, %v1098, %v1100
        %v1102 = vrot.slane %v361, 4
        %v1103 = vsel %vm1086, %v1100, %v1102
        %v1113 = vunpack.c.l.bf16 %v1089
        %v1114 = vunpack.c.h.bf16 %v1089
        %v1115 = vunpack.c.l.bf16 %v1091
        %v1116 = vunpack.c.h.bf16 %v1091
        %v1117 = vunpack.c.l.bf16 %v1093
        %v1118 = vunpack.c.h.bf16 %v1093
        %v1119 = vunpack.c.l.bf16 %v1095
        %v1120 = vunpack.c.h.bf16 %v1095
        %v1121 = vunpack.c.l.bf16 %v1097
        %v1122 = vunpack.c.h.bf16 %v1097
        %v1123 = vunpack.c.l.bf16 %v1099
        %v1124 = vunpack.c.h.bf16 %v1099
        %v1125 = vunpack.c.l.bf16 %v1101
        %v1126 = vunpack.c.h.bf16 %v1101
        %v1127 = vunpack.c.l.bf16 %v1103
        %v1128 = vunpack.c.h.bf16 %v1103
        %v1129 = vunpack.c.l.bf16 %v1102
        %vm1147 = vcmask 1041408
        %v1148 = vrot.slane %v1113, 6
        %v1149 = vrot.slane %v1114, 6
        %v1150 = vsel %vm1147, %v1148, %v1149
        %v1151 = vrot.slane %v1115, 6
        %v1152 = vsel %vm1147, %v1149, %v1151
        %v1153 = vrot.slane %v1116, 6
        %v1154 = vsel %vm1147, %v1151, %v1153
        %v1155 = vrot.slane %v1117, 6
        %v1156 = vsel %vm1147, %v1153, %v1155
        %v1157 = vrot.slane %v1118, 6
        %v1158 = vsel %vm1147, %v1155, %v1157
        %v1159 = vrot.slane %v1119, 6
        %v1160 = vsel %vm1147, %v1157, %v1159
        %v1161 = vrot.slane %v1120, 6
        %v1162 = vsel %vm1147, %v1159, %v1161
        %v1163 = vrot.slane %v1121, 6
        %v1164 = vsel %vm1147, %v1161, %v1163
        %v1165 = vrot.slane %v1122, 6
        %v1166 = vsel %vm1147, %v1163, %v1165
        %v1167 = vrot.slane %v1123, 6
        %v1168 = vsel %vm1147, %v1165, %v1167
        %v1169 = vrot.slane %v1124, 6
        %v1170 = vsel %vm1147, %v1167, %v1169
        %v1171 = vrot.slane %v1125, 6
        %v1172 = vsel %vm1147, %v1169, %v1171
        %v1173 = vrot.slane %v1126, 6
        %v1174 = vsel %vm1147, %v1171, %v1173
        %v1175 = vrot.slane %v1127, 6
        %v1176 = vsel %vm1147, %v1173, %v1175
        %v1177 = vrot.slane %v1128, 6
        %v1178 = vsel %vm1147, %v1175, %v1177
        %v1179 = vrot.slane %v1129, 6
        %v1180 = vsel %vm1147, %v1177, %v1179
        %v1197 = vadd.f32 %v1070, %v1150
        %v1198 = vadd.f32 %v1071, %v1152
        %v1199 = vadd.f32 %v1072, %v1154
        %v1200 = vadd.f32 %v1073, %v1156
        %v1201 = vadd.f32 %v1074, %v1158
        %v1202 = vadd.f32 %v1075, %v1160
        %v1203 = vadd.f32 %v1076, %v1162
        %v1204 = vadd.f32 %v1077, %v1164
        %v1205 = vadd.f32 %v1078, %v1166
        %v1206 = vadd.f32 %v1079, %v1168
        %v1207 = vadd.f32 %v1080, %v1170
        %v1208 = vadd.f32 %v1081, %v1172
        %v1209 = vadd.f32 %v1082, %v1174
        %v1210 = vadd.f32 %v1083, %v1176
        %v1211 = vadd.f32 %v1084, %v1178
        %v1212 = vadd.f32 %v1085, %v1180
        %v1213 = vpack.c.bf16 %v1198, %v1197
        %v1214 = vpack.c.bf16 %v1200, %v1199
        %v1215 = vpack.c.bf16 %v1202, %v1201
        %v1216 = vpack.c.bf16 %v1204, %v1203
        %v1217 = vpack.c.bf16 %v1206, %v1205
        %v1218 = vpack.c.bf16 %v1208, %v1207
        %v1219 = vpack.c.bf16 %v1210, %v1209
        %v1220 = vpack.c.bf16 %v1212, %v1211
        %1221 = vst [vmem:[#allocation2 + $0x8] sm:$0xff] %v1213
        %1222 = vst [vmem:[#allocation2 + $0x10] sm:$0xff] %v1214
        %1223 = vst [vmem:[#allocation2 + $0x18] sm:$0xff] %v1215
        %1224 = vst [vmem:[#allocation2 + $0x20] sm:$0xff] %v1216
        %1225 = vst [vmem:[#allocation2 + $0x28] sm:$0xff] %v1217
        %1226 = vst [vmem:[#allocation2 + $0x30] sm:$0xff] %v1218
        %1227 = vst [vmem:[#allocation2 + $0x38] sm:$0xff] %v1219
        %1228 = vst [vmem:[#allocation2 + $0x40] sm:$0xff] %v1220
        %v1230 = vcombine.high %v248, %v248
        %v1232 = vunpack.c.l.s4 1983009808
        %v1233 = vunpack.c.0.s8 %v1232
        %v1234 = vlaneseq
        %v1235 = vshrl.u32 %v1234, 7
        %v1236 = vsub.s32 %v1233, %v1235
        %v1237 = vrot.slane %v1230, %v1236
        %v1238 = vcombine.high %v1237, %v1237
        %v1239 = vrot.slane %v1238, 7
        %v1240 = vrot.slane %v1239, 2
        %1242 = vst [vmem:[#allocation3] sm:$0x1] %v1240
        %v1243 = vld [vmem:[#allocation2 + $0x40] sm:$0x80]
        %v1244 = vld [vmem:[#allocation3] sm:$0x2]
        %v1246 = vcombine.low %v1244, %v1244
        %v1248 = vunpack.c.l.s4 1983009808
        %v1249 = vunpack.c.0.s8 %v1248
        %v1250 = vlaneseq
        %v1251 = vshrl.u32 %v1250, 7
        %v1252 = vsub.s32 %v1249, %v1251
        %v1253 = vrot.slane %v1246, %v1252
        %v1254 = vcombine.low %v1253, %v1253
        %1256 = vst [vmem:[#allocation2] sm:$0x80] %v1254
        %v1257 = vld [vmem:[#allocation2] sm:$0x80]
        %v1258 = vld [vmem:[#allocation2 + $0x8] sm:$0xff]
        %v1259 = vld [vmem:[#allocation2 + $0x10] sm:$0xff]
        %v1260 = vld [vmem:[#allocation2 + $0x18] sm:$0xff]
        %v1261 = vld [vmem:[#allocation2 + $0x20] sm:$0xff]
        %v1262 = vld [vmem:[#allocation2 + $0x28] sm:$0xff]
        %v1263 = vld [vmem:[#allocation2 + $0x30] sm:$0xff]
        %v1264 = vld [vmem:[#allocation2 + $0x38] sm:$0xff]
        %v1265 = vld [vmem:[#allocation2 + $0x40] sm:$0x7f]
        %v1266 = vld [vmem:[#allocation2 + $0x40] sm:$0xff]
        %v1268 = vshrl.u32 %v1257, 16
        %v1271 = vshll.u32 %v1258, 16
        %v1273 = vrot.slane %v1271, 1
        %v1274 = vsel %vm271, %v1268, %v1273
        %v1275 = vshrl.u32 %v1258, 16
        %v1277 = vor.u32 %v1275, %v1273
        %v1279 = vshll.u32 %v1259, 16
        %v1281 = vrot.slane %v1279, 1
        %v1282 = vsel %vm271, %v1277, %v1281
        %v1283 = vshrl.u32 %v1259, 16
        %v1285 = vor.u32 %v1283, %v1281
        %v1287 = vshll.u32 %v1260, 16
        %v1289 = vrot.slane %v1287, 1
        %v1290 = vsel %vm271, %v1285, %v1289
        %v1291 = vshrl.u32 %v1260, 16
        %v1293 = vor.u32 %v1291, %v1289
        %v1295 = vshll.u32 %v1261, 16
        %v1297 = vrot.slane %v1295, 1
        %v1298 = vsel %vm271, %v1293, %v1297
        %v1299 = vshrl.u32 %v1261, 16
        %v1301 = vor.u32 %v1299, %v1297
        %v1303 = vshll.u32 %v1262, 16
        %v1305 = vrot.slane %v1303, 1
        %v1306 = vsel %vm271, %v1301, %v1305
        %v1307 = vshrl.u32 %v1262, 16
        %v1309 = vor.u32 %v1307, %v1305
        %v1311 = vshll.u32 %v1263, 16
        %v1313 = vrot.slane %v1311, 1
        %v1314 = vsel %vm271, %v1309, %v1313
        %v1315 = vshrl.u32 %v1263, 16
        %v1317 = vor.u32 %v1315, %v1313
        %v1319 = vshll.u32 %v1264, 16
        %v1321 = vrot.slane %v1319, 1
        %v1322 = vsel %vm271, %v1317, %v1321
        %v1323 = vshrl.u32 %v1264, 16
        %v1325 = vor.u32 %v1323, %v1321
        %v1327 = vshll.u32 %v1266, 16
        %v1329 = vrot.slane %v1327, 1
        %v1330 = vsel %vm271, %v1325, %v1329
        %v1331 = vshrl.u32 %v1266, 16
        %v1333 = vor.u32 %v1331, %v1329
        %v1342 = vrot.slane %v1258, 1
        %v1343 = vrot.slane %v1259, 1
        %v1344 = vsel %vm347, %v1342, %v1343
        %v1345 = vrot.slane %v1260, 1
        %v1346 = vsel %vm347, %v1343, %v1345
        %v1347 = vrot.slane %v1261, 1
        %v1348 = vsel %vm347, %v1345, %v1347
        %v1349 = vrot.slane %v1262, 1
        %v1350 = vsel %vm347, %v1347, %v1349
        %v1351 = vrot.slane %v1263, 1
        %v1352 = vsel %vm347, %v1349, %v1351
        %v1353 = vrot.slane %v1264, 1
        %v1354 = vsel %vm347, %v1351, %v1353
        %v1355 = vrot.slane %v1266, 1
        %v1356 = vsel %vm347, %v1353, %v1355
        %s1357 = scalar_lea.vmem %s1, 384
        %v1358 = vld [vmem:[%s1357] sm:$0xff]
        %v1359 = vld [vmem:[%s1357 + $0x8] sm:$0xff]
        %v1360 = vld [vmem:[%s1357 + $0x10] sm:$0xff]
        %v1361 = vld [vmem:[%s1357 + $0x18] sm:$0xff]
        %v1362 = vld [vmem:[%s1357 + $0x20] sm:$0xff]
        %v1363 = vld [vmem:[%s1357 + $0x28] sm:$0xff]
        %v1364 = vld [vmem:[%s1357 + $0x30] sm:$0xff]
        %v1365 = vld [vmem:[%s1357 + $0x38] sm:$0xff]
        %v1366 = vld [vmem:[%s1357 + $0x40] sm:$0xff]
        %v1367 = vld [vmem:[%s1357 + $0x48] sm:$0xff]
        %v1368 = vld [vmem:[%s1357 + $0x50] sm:$0xff]
        %v1369 = vld [vmem:[%s1357 + $0x58] sm:$0xff]
        %v1370 = vld [vmem:[%s1357 + $0x60] sm:$0xff]
        %v1371 = vld [vmem:[%s1357 + $0x68] sm:$0xff]
        %v1372 = vld [vmem:[%s1357 + $0x70] sm:$0xff]
        %v1373 = vld [vmem:[%s1357 + $0x78] sm:$0xff]
        %v1374 = vld [vmem:[%s1357 + $0x80] sm:$0xff]
        %v1375 = vld [vmem:[%s1357 + $0x88] sm:$0xff]
        %v1376 = vld [vmem:[%s1357 + $0x90] sm:$0xff]
        %v1377 = vld [vmem:[%s1357 + $0x98] sm:$0xff]
        %v1378 = vld [vmem:[%s1357 + $0xa0] sm:$0xff]
        %v1379 = vld [vmem:[%s1357 + $0xa8] sm:$0xff]
        %v1380 = vld [vmem:[%s1357 + $0xb0] sm:$0xff]
        %v1381 = vld [vmem:[%s1357 + $0xb8] sm:$0xff]
        %v1382 = vld [vmem:[%s1357 + $0xc0] sm:$0xff]
        %v1383 = vld [vmem:[%s1357 + $0xc8] sm:$0xff]
        %v1384 = vld [vmem:[%s1357 + $0xd0] sm:$0xff]
        %v1385 = vld [vmem:[%s1357 + $0xd8] sm:$0xff]
        %v1386 = vld [vmem:[%s1357 + $0xe0] sm:$0xff]
        %v1387 = vld [vmem:[%s1357 + $0xe8] sm:$0xff]
        %v1388 = vld [vmem:[%s1357 + $0xf0] sm:$0xff]
        %v1389 = vld [vmem:[%s1357 + $0xf8] sm:$0xff]
        %v1390 = vld [vmem:[%s1357 + $0x100] sm:$0xff]
        %v1391 = vld [vmem:[%s1357 + $0x108] sm:$0xff]
        %v1392 = vld [vmem:[%s1357 + $0x110] sm:$0xff]
        %v1393 = vld [vmem:[%s1357 + $0x118] sm:$0xff]
        %v1394 = vld [vmem:[%s1357 + $0x120] sm:$0xff]
        %v1395 = vld [vmem:[%s1357 + $0x128] sm:$0xff]
        %v1396 = vld [vmem:[%s1357 + $0x130] sm:$0xff]
        %v1397 = vld [vmem:[%s1357 + $0x138] sm:$0xff]
        %v1398 = vld [vmem:[%s1357 + $0x140] sm:$0xff]
        %v1399 = vld [vmem:[%s1357 + $0x148] sm:$0xff]
        %v1400 = vld [vmem:[%s1357 + $0x150] sm:$0xff]
        %v1401 = vld [vmem:[%s1357 + $0x158] sm:$0xff]
        %v1402 = vld [vmem:[%s1357 + $0x160] sm:$0xff]
        %v1403 = vld [vmem:[%s1357 + $0x168] sm:$0xff]
        %v1404 = vld [vmem:[%s1357 + $0x170] sm:$0xff]
        %v1405 = vld [vmem:[%s1357 + $0x178] sm:$0xff]
        %v1406 = vlaneseq
        %v1407 = vshrl.u32 %v1406, 7
        %v1408 = vsub.s32 1, %v1407
        %v1409 = vrot.slane %v247, %v1408
        %v1410 = vlaneseq
        %v1411 = vshrl.u32 %v1410, 7
        %v1412 = vsub.s32 3, %v1411
        %v1413 = vrot.slane %v247, %v1412
        %v1416 = vlaneseq
        %v1417 = vshrl.u32 %v1416, 7
        %v1418 = vsub.s32 1, %v1417
        %v1419 = vrot.slane %v1409, %v1418
        %v1420 = vlaneseq
        %v1421 = vshrl.u32 %v1420, 7
        %v1422 = vsub.s32 1, %v1421
        %v1423 = vrot.slane %v1413, %v1422
        %v1426 = vrot.slane %v1257, 7
        %v1427 = vrot.slane %v1258, 7
        %v1428 = vsel %vm432, %v1426, %v1427
        %v1429 = vrot.slane %v1274, 7
        %v1430 = vrot.slane %v1282, 7
        %v1431 = vsel %vm432, %v1429, %v1430
        %v1432 = vrot.slane %v1342, 7
        %v1433 = vrot.slane %v1344, 7
        %v1434 = vsel %vm432, %v1432, %v1433
        %v1435 = vrot.slane %v1259, 7
        %v1436 = vsel %vm432, %v1427, %v1435
        %v1437 = vrot.slane %v1290, 7
        %v1438 = vsel %vm432, %v1430, %v1437
        %v1439 = vrot.slane %v1346, 7
        %v1440 = vsel %vm432, %v1433, %v1439
        %v1441 = vrot.slane %v1260, 7
        %v1442 = vsel %vm432, %v1435, %v1441
        %v1443 = vrot.slane %v1298, 7
        %v1444 = vsel %vm432, %v1437, %v1443
        %v1445 = vrot.slane %v1348, 7
        %v1446 = vsel %vm432, %v1439, %v1445
        %v1447 = vrot.slane %v1261, 7
        %v1448 = vsel %vm432, %v1441, %v1447
        %v1449 = vrot.slane %v1306, 7
        %v1450 = vsel %vm432, %v1443, %v1449
        %v1451 = vrot.slane %v1350, 7
        %v1452 = vsel %vm432, %v1445, %v1451
        %v1453 = vrot.slane %v1262, 7
        %v1454 = vsel %vm432, %v1447, %v1453
        %v1455 = vrot.slane %v1314, 7
        %v1456 = vsel %vm432, %v1449, %v1455
        %v1457 = vrot.slane %v1352, 7
        %v1458 = vsel %vm432, %v1451, %v1457
        %v1459 = vrot.slane %v1263, 7
        %v1460 = vsel %vm432, %v1453, %v1459
        %v1461 = vrot.slane %v1322, 7
        %v1462 = vsel %vm432, %v1455, %v1461
        %v1463 = vrot.slane %v1354, 7
        %v1464 = vsel %vm432, %v1457, %v1463
        %v1465 = vrot.slane %v1264, 7
        %v1466 = vsel %vm432, %v1459, %v1465
        %v1467 = vrot.slane %v1330, 7
        %v1468 = vsel %vm432, %v1461, %v1467
        %v1469 = vrot.slane %v1356, 7
        %v1470 = vsel %vm432, %v1463, %v1469
        %v1471 = vrot.slane %v1265, 7
        %v1472 = vsel %vm432, %v1465, %v1471
        %v1473 = vrot.slane %v1333, 7
        %v1474 = vsel %vm432, %v1467, %v1473
        %v1475 = vrot.slane %v1355, 7
        %v1476 = vsel %vm432, %v1469, %v1475
        %v1549 = vunpack.c.l.b16 %v1358
        %v1550 = vunpack.c.h.b16 %v1358
        %v1551 = vunpack.c.l.b16 %v1359
        %v1552 = vunpack.c.h.b16 %v1359
        %v1553 = vunpack.c.l.b16 %v1360
        %v1554 = vunpack.c.h.b16 %v1360
        %v1555 = vunpack.c.l.b16 %v1361
        %v1556 = vunpack.c.h.b16 %v1361
        %v1557 = vunpack.c.l.b16 %v1362
        %v1558 = vunpack.c.h.b16 %v1362
        %v1559 = vunpack.c.l.b16 %v1363
        %v1560 = vunpack.c.h.b16 %v1363
        %v1561 = vunpack.c.l.b16 %v1364
        %v1562 = vunpack.c.h.b16 %v1364
        %v1563 = vunpack.c.l.b16 %v1365
        %v1564 = vunpack.c.h.b16 %v1365
        %v1565 = vunpack.c.l.b16 %v1366
        %v1566 = vunpack.c.h.b16 %v1366
        %v1567 = vunpack.c.l.b16 %v1367
        %v1568 = vunpack.c.h.b16 %v1367
        %v1569 = vunpack.c.l.b16 %v1368
        %v1570 = vunpack.c.h.b16 %v1368
        %v1571 = vunpack.c.l.b16 %v1369
        %v1572 = vunpack.c.h.b16 %v1369
        %v1573 = vunpack.c.l.b16 %v1370
        %v1574 = vunpack.c.h.b16 %v1370
        %v1575 = vunpack.c.l.b16 %v1371
        %v1576 = vunpack.c.h.b16 %v1371
        %v1577 = vunpack.c.l.b16 %v1372
        %v1578 = vunpack.c.h.b16 %v1372
        %v1579 = vunpack.c.l.b16 %v1373
        %v1580 = vunpack.c.h.b16 %v1373
        %v1581 = vunpack.c.l.b16 %v1374
        %v1582 = vunpack.c.h.b16 %v1374
        %v1583 = vunpack.c.l.b16 %v1375
        %v1584 = vunpack.c.h.b16 %v1375
        %v1585 = vunpack.c.l.b16 %v1376
        %v1586 = vunpack.c.h.b16 %v1376
        %v1587 = vunpack.c.l.b16 %v1377
        %v1588 = vunpack.c.h.b16 %v1377
        %v1589 = vunpack.c.l.b16 %v1378
        %v1590 = vunpack.c.h.b16 %v1378
        %v1591 = vunpack.c.l.b16 %v1379
        %v1592 = vunpack.c.h.b16 %v1379
        %v1593 = vunpack.c.l.b16 %v1380
        %v1594 = vunpack.c.h.b16 %v1380
        %v1595 = vunpack.c.l.b16 %v1381
        %v1596 = vunpack.c.h.b16 %v1381
        %v1597 = vunpack.c.l.b16 %v1382
        %v1598 = vunpack.c.h.b16 %v1382
        %v1599 = vunpack.c.l.b16 %v1383
        %v1600 = vunpack.c.h.b16 %v1383
        %v1601 = vunpack.c.l.b16 %v1384
        %v1602 = vunpack.c.h.b16 %v1384
        %v1603 = vunpack.c.l.b16 %v1385
        %v1604 = vunpack.c.h.b16 %v1385
        %v1605 = vunpack.c.l.b16 %v1386
        %v1606 = vunpack.c.h.b16 %v1386
        %v1607 = vunpack.c.l.b16 %v1387
        %v1608 = vunpack.c.h.b16 %v1387
        %v1609 = vunpack.c.l.b16 %v1388
        %v1610 = vunpack.c.h.b16 %v1388
        %v1611 = vunpack.c.l.b16 %v1389
        %v1612 = vunpack.c.h.b16 %v1389
        %v1613 = vunpack.c.l.b16 %v1390
        %v1614 = vunpack.c.h.b16 %v1390
        %v1615 = vunpack.c.l.b16 %v1391
        %v1616 = vunpack.c.h.b16 %v1391
        %v1617 = vunpack.c.l.b16 %v1392
        %v1618 = vunpack.c.h.b16 %v1392
        %v1619 = vunpack.c.l.b16 %v1393
        %v1620 = vunpack.c.h.b16 %v1393
        %v1621 = vunpack.c.l.b16 %v1394
        %v1622 = vunpack.c.h.b16 %v1394
        %v1623 = vunpack.c.l.b16 %v1395
        %v1624 = vunpack.c.h.b16 %v1395
        %v1625 = vunpack.c.l.b16 %v1396
        %v1626 = vunpack.c.h.b16 %v1396
        %v1627 = vunpack.c.l.b16 %v1397
        %v1628 = vunpack.c.h.b16 %v1397
        %v1629 = vunpack.c.l.b16 %v1398
        %v1630 = vunpack.c.h.b16 %v1398
        %v1631 = vunpack.c.l.b16 %v1399
        %v1632 = vunpack.c.h.b16 %v1399
        %v1633 = vunpack.c.l.b16 %v1400
        %v1634 = vunpack.c.h.b16 %v1400
        %v1635 = vunpack.c.l.b16 %v1401
        %v1636 = vunpack.c.h.b16 %v1401
        %v1637 = vunpack.c.l.b16 %v1402
        %v1638 = vunpack.c.h.b16 %v1402
        %v1639 = vunpack.c.l.b16 %v1403
        %v1640 = vunpack.c.h.b16 %v1403
        %v1641 = vunpack.c.l.b16 %v1404
        %v1642 = vunpack.c.h.b16 %v1404
        %v1643 = vunpack.c.l.b16 %v1405
        %v1644 = vunpack.c.h.b16 %v1405
        %v1645 = vpack.c.b16 %v1551, %v1549
        %v1646 = vpack.c.b16 %v1552, %v1550
        %v1647 = vpack.c.b16 %v1555, %v1553
        %v1648 = vpack.c.b16 %v1556, %v1554
        %v1649 = vpack.c.b16 %v1559, %v1557
        %v1650 = vpack.c.b16 %v1560, %v1558
        %v1651 = vpack.c.b16 %v1563, %v1561
        %v1652 = vpack.c.b16 %v1564, %v1562
        %v1653 = vpack.c.b16 %v1567, %v1565
        %v1654 = vpack.c.b16 %v1568, %v1566
        %v1655 = vpack.c.b16 %v1571, %v1569
        %v1656 = vpack.c.b16 %v1572, %v1570
        %v1657 = vpack.c.b16 %v1575, %v1573
        %v1658 = vpack.c.b16 %v1576, %v1574
        %v1659 = vpack.c.b16 %v1579, %v1577
        %v1660 = vpack.c.b16 %v1580, %v1578
        %v1661 = vpack.c.b16 %v1583, %v1581
        %v1662 = vpack.c.b16 %v1584, %v1582
        %v1663 = vpack.c.b16 %v1587, %v1585
        %v1664 = vpack.c.b16 %v1588, %v1586
        %v1665 = vpack.c.b16 %v1591, %v1589
        %v1666 = vpack.c.b16 %v1592, %v1590
        %v1667 = vpack.c.b16 %v1595, %v1593
        %v1668 = vpack.c.b16 %v1596, %v1594
        %v1669 = vpack.c.b16 %v1599, %v1597
        %v1670 = vpack.c.b16 %v1600, %v1598
        %v1671 = vpack.c.b16 %v1603, %v1601
        %v1672 = vpack.c.b16 %v1604, %v1602
        %v1673 = vpack.c.b16 %v1607, %v1605
        %v1674 = vpack.c.b16 %v1608, %v1606
        %v1675 = vpack.c.b16 %v1611, %v1609
        %v1676 = vpack.c.b16 %v1612, %v1610
        %v1677 = vpack.c.b16 %v1615, %v1613
        %v1678 = vpack.c.b16 %v1616, %v1614
        %v1679 = vpack.c.b16 %v1619, %v1617
        %v1680 = vpack.c.b16 %v1620, %v1618
        %v1681 = vpack.c.b16 %v1623, %v1621
        %v1682 = vpack.c.b16 %v1624, %v1622
        %v1683 = vpack.c.b16 %v1627, %v1625
        %v1684 = vpack.c.b16 %v1628, %v1626
        %v1685 = vpack.c.b16 %v1631, %v1629
        %v1686 = vpack.c.b16 %v1632, %v1630
        %v1687 = vpack.c.b16 %v1635, %v1633
        %v1688 = vpack.c.b16 %v1636, %v1634
        %v1689 = vpack.c.b16 %v1639, %v1637
        %v1690 = vpack.c.b16 %v1640, %v1638
        %v1691 = vpack.c.b16 %v1643, %v1641
        %v1692 = vpack.c.b16 %v1644, %v1642
        %1741 = vmatprep.subr.bf16.mxu0 %v1646
        %1742 = vmatpush1.bf16.msra.mxu0 %v1645
        %1743 = vmatprep.subr.bf16.mxu0 %v1648
        %1744 = vmatpush1.bf16.msra.mxu0 %v1647
        %1745 = vmatprep.subr.bf16.mxu0 %v1650
        %1746 = vmatpush1.bf16.msra.mxu0 %v1649
        %1747 = vmatprep.subr.bf16.mxu0 %v1652
        %1748 = vmatpush1.bf16.msra.mxu0 %v1651
        %1749 = vmatprep.subr.bf16.mxu0 %v1654
        %1750 = vmatpush1.bf16.msra.mxu0 %v1653
        %1751 = vmatprep.subr.bf16.mxu0 %v1656
        %1752 = vmatpush1.bf16.msra.mxu0 %v1655
        %1753 = vmatprep.subr.bf16.mxu0 %v1658
        %1754 = vmatpush1.bf16.msra.mxu0 %v1657
        %1755 = vmatprep.subr.bf16.mxu0 %v1660
        %1756 = vmatpush1.bf16.msra.mxu0 %v1659
        %1757 = vmatprep.subr.bf16.mxu0 %v1662
        %1758 = vmatpush1.bf16.msra.mxu0 %v1661
        %1759 = vmatprep.subr.bf16.mxu0 %v1664
        %1760 = vmatpush1.bf16.msra.mxu0 %v1663
        %1761 = vmatprep.subr.bf16.mxu0 %v1666
        %1762 = vmatpush1.bf16.msra.mxu0 %v1665
        %1763 = vmatprep.subr.bf16.mxu0 %v1668
        %1764 = vmatpush1.bf16.msra.mxu0 %v1667
        %1765 = vmatprep.subr.bf16.mxu0 %v1670
        %1766 = vmatpush1.bf16.msra.mxu0 %v1669
        %1767 = vmatprep.subr.bf16.mxu0 %v1672
        %1768 = vmatpush1.bf16.msra.mxu0 %v1671
        %1769 = vmatprep.subr.bf16.mxu0 %v1674
        %1770 = vmatpush1.bf16.msra.mxu0 %v1673
        %1771 = vmatprep.subr.bf16.mxu0 %v1676
        %1772 = vmatpush1.bf16.msra.mxu0 %v1675
        %1773 = vmatprep.mubr.bf16.mxu0 %v1431
        %1774 = vmatmul.mubr.bf16.gmra.mrb[0].mxu0 %v1428
        %v1775 = vpop.f32.mrb[0].mxu0
        %v1776 = vadd.f32 %v1419, %v1775
        %v1777 = vpop.f32.mrb[0].mxu0
        %v1778 = vadd.f32 %v1423, %v1777
        %v1779 = vpop.f32.mrb[0].mxu0
        %v1780 = vadd.f32 %v1419, %v1779
        %v1781 = vpop.f32.mrb[0].mxu0
        %v1782 = vadd.f32 %v1423, %v1781
        %1783 = vmatprep.mubr.bf16.mxu0 %v1438
        %1784 = vmatmul.mubr.bf16.gmra.mrb[0].mxu0 %v1436
        %v1785 = vpop.f32.mrb[0].mxu0
        %v1786 = vadd.f32 %v1419, %v1785
        %v1787 = vpop.f32.mrb[0].mxu0
        %v1788 = vadd.f32 %v1423, %v1787
        %v1789 = vpop.f32.mrb[0].mxu0
        %v1790 = vadd.f32 %v1419, %v1789
        %v1791 = vpop.f32.mrb[0].mxu0
        %v1792 = vadd.f32 %v1423, %v1791
        %1793 = vmatprep.mubr.bf16.mxu0 %v1444
        %1794 = vmatmul.mubr.bf16.gmra.mrb[0].mxu0 %v1442
        %v1795 = vpop.f32.mrb[0].mxu0
        %v1796 = vadd.f32 %v1419, %v1795
        %v1797 = vpop.f32.mrb[0].mxu0
        %v1798 = vadd.f32 %v1423, %v1797
        %v1799 = vpop.f32.mrb[0].mxu0
        %v1800 = vadd.f32 %v1419, %v1799
        %v1801 = vpop.f32.mrb[0].mxu0
        %v1802 = vadd.f32 %v1423, %v1801
        %1803 = vmatprep.mubr.bf16.mxu0 %v1450
        %1804 = vmatmul.mubr.bf16.gmra.mrb[0].mxu0 %v1448
        %v1805 = vpop.f32.mrb[0].mxu0
        %v1806 = vadd.f32 %v1419, %v1805
        %v1807 = vpop.f32.mrb[0].mxu0
        %v1808 = vadd.f32 %v1423, %v1807
        %v1809 = vpop.f32.mrb[0].mxu0
        %v1810 = vadd.f32 %v1419, %v1809
        %v1811 = vpop.f32.mrb[0].mxu0
        %v1812 = vadd.f32 %v1423, %v1811
        %1813 = vmatprep.mubr.bf16.mxu0 %v1456
        %1814 = vmatmul.mubr.bf16.gmra.mrb[0].mxu0 %v1454
        %v1815 = vpop.f32.mrb[0].mxu0
        %v1816 = vadd.f32 %v1419, %v1815
        %v1817 = vpop.f32.mrb[0].mxu0
        %v1818 = vadd.f32 %v1423, %v1817
        %v1819 = vpop.f32.mrb[0].mxu0
        %v1820 = vadd.f32 %v1419, %v1819
        %v1821 = vpop.f32.mrb[0].mxu0
        %v1822 = vadd.f32 %v1423, %v1821
        %1823 = vmatprep.mubr.bf16.mxu0 %v1462
        %1824 = vmatmul.mubr.bf16.gmra.mrb[0].mxu0 %v1460
        %v1825 = vpop.f32.mrb[0].mxu0
        %v1826 = vadd.f32 %v1419, %v1825
        %v1827 = vpop.f32.mrb[0].mxu0
        %v1828 = vadd.f32 %v1423, %v1827
        %v1829 = vpop.f32.mrb[0].mxu0
        %v1830 = vadd.f32 %v1419, %v1829
        %v1831 = vpop.f32.mrb[0].mxu0
        %v1832 = vadd.f32 %v1423, %v1831
        %1833 = vmatprep.mubr.bf16.mxu0 %v1468
        %1834 = vmatmul.mubr.bf16.gmra.mrb[0].mxu0 %v1466
        %v1835 = vpop.f32.mrb[0].mxu0
        %v1836 = vadd.f32 %v1419, %v1835
        %v1837 = vpop.f32.mrb[0].mxu0
        %v1838 = vadd.f32 %v1423, %v1837
        %v1839 = vpop.f32.mrb[0].mxu0
        %v1840 = vadd.f32 %v1419, %v1839
        %v1841 = vpop.f32.mrb[0].mxu0
        %v1842 = vadd.f32 %v1423, %v1841
        %1843 = vmatprep.mubr.bf16.mxu0 %v1474
        %1844 = vmatmul.mubr.bf16.gmra.mrb[0].mxu0 %v1472
        %v1845 = vpop.f32.mrb[0].mxu0
        %v1846 = vadd.f32 %v1419, %v1845
        %v1847 = vpop.f32.mrb[0].mxu0
        %v1848 = vadd.f32 %v1423, %v1847
        %v1849 = vpop.f32.mrb[0].mxu0
        %v1850 = vadd.f32 %v1419, %v1849
        %v1851 = vpop.f32.mrb[0].mxu0
        %v1852 = vadd.f32 %v1423, %v1851
        %1853 = vdwg.mxu0
        %1854 = vmatprep.subr.bf16.mxu0 %v1678
        %1855 = vmatpush1.bf16.msra.mxu0 %v1677
        %1856 = vmatprep.subr.bf16.mxu0 %v1680
        %1857 = vmatpush1.bf16.msra.mxu0 %v1679
        %1858 = vmatprep.subr.bf16.mxu0 %v1682
        %1859 = vmatpush1.bf16.msra.mxu0 %v1681
        %1860 = vmatprep.subr.bf16.mxu0 %v1684
        %1861 = vmatpush1.bf16.msra.mxu0 %v1683
        %1862 = vmatprep.subr.bf16.mxu0 %v1686
        %1863 = vmatpush1.bf16.msra.mxu0 %v1685
        %1864 = vmatprep.subr.bf16.mxu0 %v1688
        %1865 = vmatpush1.bf16.msra.mxu0 %v1687
        %1866 = vmatprep.subr.bf16.mxu0 %v1690
        %1867 = vmatpush1.bf16.msra.mxu0 %v1689
        %1868 = vmatprep.subr.bf16.mxu0 %v1692
        %1869 = vmatpush1.bf16.msra.mxu0 %v1691
        %1870 = vmatprep.subr.bf16.mxu0 0
        %1871 = vmatpush1.bf16.msra.mxu0 0
        %1872 = vmatprep.subr.bf16.mxu0 0
        %1873 = vmatpush1.bf16.msra.mxu0 0
        %1874 = vmatprep.subr.bf16.mxu0 0
        %1875 = vmatpush1.bf16.msra.mxu0 0
        %1876 = vmatprep.subr.bf16.mxu0 0
        %1877 = vmatpush1.bf16.msra.mxu0 0
        %1878 = vmatprep.subr.bf16.mxu0 0
        %1879 = vmatpush1.bf16.msra.mxu0 0
        %1880 = vmatprep.subr.bf16.mxu0 0
        %1881 = vmatpush1.bf16.msra.mxu0 0
        %1882 = vmatprep.subr.bf16.mxu0 0
        %1883 = vmatpush1.bf16.msra.mxu0 0
        %1884 = vmatprep.subr.bf16.mxu0 0
        %1885 = vmatpush1.bf16.msra.mxu0 0
        %1886 = vmatprep.mubr.bf16.mxu0 0
        %1887 = vmatmul.mubr.bf16.gmra.mrb[0].mxu0 %v1434
        %v1888 = vpop.f32.mrb[0].mxu0
        %v1889 = vadd.f32 %v1776, %v1888
        %v1890 = vpop.f32.mrb[0].mxu0
        %v1891 = vadd.f32 %v1778, %v1890
        %v1892 = vpop.f32.mrb[0].mxu0
        %v1893 = vadd.f32 %v1780, %v1892
        %v1894 = vpop.f32.mrb[0].mxu0
        %v1895 = vadd.f32 %v1782, %v1894
        %1896 = vmatprep.mubr.bf16.mxu0 0
        %1897 = vmatmul.mubr.bf16.gmra.mrb[0].mxu0 %v1440
        %v1898 = vpop.f32.mrb[0].mxu0
        %v1899 = vadd.f32 %v1786, %v1898
        %v1900 = vpop.f32.mrb[0].mxu0
        %v1901 = vadd.f32 %v1788, %v1900
        %v1902 = vpop.f32.mrb[0].mxu0
        %v1903 = vadd.f32 %v1790, %v1902
        %v1904 = vpop.f32.mrb[0].mxu0
        %v1905 = vadd.f32 %v1792, %v1904
        %1906 = vmatprep.mubr.bf16.mxu0 0
        %1907 = vmatmul.mubr.bf16.gmra.mrb[0].mxu0 %v1446
        %v1908 = vpop.f32.mrb[0].mxu0
        %v1909 = vadd.f32 %v1796, %v1908
        %v1910 = vpop.f32.mrb[0].mxu0
        %v1911 = vadd.f32 %v1798, %v1910
        %v1912 = vpop.f32.mrb[0].mxu0
        %v1913 = vadd.f32 %v1800, %v1912
        %v1914 = vpop.f32.mrb[0].mxu0
        %v1915 = vadd.f32 %v1802, %v1914
        %1916 = vmatprep.mubr.bf16.mxu0 0
        %1917 = vmatmul.mubr.bf16.gmra.mrb[0].mxu0 %v1452
        %v1918 = vpop.f32.mrb[0].mxu0
        %v1919 = vadd.f32 %v1806, %v1918
        %v1920 = vpop.f32.mrb[0].mxu0
        %v1921 = vadd.f32 %v1808, %v1920
        %v1922 = vpop.f32.mrb[0].mxu0
        %v1923 = vadd.f32 %v1810, %v1922
        %v1924 = vpop.f32.mrb[0].mxu0
        %v1925 = vadd.f32 %v1812, %v1924
        %1926 = vmatprep.mubr.bf16.mxu0 0
        %1927 = vmatmul.mubr.bf16.gmra.mrb[0].mxu0 %v1458
        %v1928 = vpop.f32.mrb[0].mxu0
        %v1929 = vadd.f32 %v1816, %v1928
        %v1930 = vpop.f32.mrb[0].mxu0
        %v1931 = vadd.f32 %v1818, %v1930
        %v1932 = vpop.f32.mrb[0].mxu0
        %v1933 = vadd.f32 %v1820, %v1932
        %v1934 = vpop.f32.mrb[0].mxu0
        %v1935 = vadd.f32 %v1822, %v1934
        %1936 = vmatprep.mubr.bf16.mxu0 0
        %1937 = vmatmul.mubr.bf16.gmra.mrb[0].mxu0 %v1464
        %v1938 = vpop.f32.mrb[0].mxu0
        %v1939 = vadd.f32 %v1826, %v1938
        %v1940 = vpop.f32.mrb[0].mxu0
        %v1941 = vadd.f32 %v1828, %v1940
        %v1942 = vpop.f32.mrb[0].mxu0
        %v1943 = vadd.f32 %v1830, %v1942
        %v1944 = vpop.f32.mrb[0].mxu0
        %v1945 = vadd.f32 %v1832, %v1944
        %1946 = vmatprep.mubr.bf16.mxu0 0
        %1947 = vmatmul.mubr.bf16.gmra.mrb[0].mxu0 %v1470
        %v1948 = vpop.f32.mrb[0].mxu0
        %v1949 = vadd.f32 %v1836, %v1948
        %v1950 = vpop.f32.mrb[0].mxu0
        %v1951 = vadd.f32 %v1838, %v1950
        %v1952 = vpop.f32.mrb[0].mxu0
        %v1953 = vadd.f32 %v1840, %v1952
        %v1954 = vpop.f32.mrb[0].mxu0
        %v1955 = vadd.f32 %v1842, %v1954
        %1956 = vmatprep.mubr.bf16.mxu0 0
        %1957 = vmatmul.mubr.bf16.gmra.mrb[0].mxu0 %v1476
        %v1958 = vpop.f32.mrb[0].mxu0
        %v1959 = vadd.f32 %v1846, %v1958
        %v1960 = vpop.f32.mrb[0].mxu0
        %v1961 = vadd.f32 %v1848, %v1960
        %v1962 = vpop.f32.mrb[0].mxu0
        %v1963 = vadd.f32 %v1850, %v1962
        %v1964 = vpop.f32.mrb[0].mxu0
        %v1965 = vadd.f32 %v1852, %v1964
        %1966 = vdwg.mxu0
        %v1967 = vxor.u32 %v1891, 2147483648
        %v1968 = vxor.u32 %v1895, 2147483648
        %v1969 = vxor.u32 %v1901, 2147483648
        %v1970 = vxor.u32 %v1905, 2147483648
        %v1971 = vxor.u32 %v1911, 2147483648
        %v1972 = vxor.u32 %v1915, 2147483648
        %v1973 = vxor.u32 %v1921, 2147483648
        %v1974 = vxor.u32 %v1925, 2147483648
        %v1975 = vxor.u32 %v1931, 2147483648
        %v1976 = vxor.u32 %v1935, 2147483648
        %v1977 = vxor.u32 %v1941, 2147483648
        %v1978 = vxor.u32 %v1945, 2147483648
        %v1979 = vxor.u32 %v1951, 2147483648
        %v1980 = vxor.u32 %v1955, 2147483648
        %v1981 = vxor.u32 %v1961, 2147483648
        %v1982 = vxor.u32 %v1965, 2147483648
        %v1983 = vmul.f32 %v1967, 1.442695
        %v1984 = vpow.pop %v1983
        %v1985 = vmul.f32 %v1968, 1.442695
        %v1986 = vpow.pop %v1985
        %v1987 = vmul.f32 %v1969, 1.442695
        %v1988 = vpow.pop %v1987
        %v1989 = vmul.f32 %v1970, 1.442695
        %v1990 = vpow.pop %v1989
        %v1991 = vmul.f32 %v1971, 1.442695
        %v1992 = vpow.pop %v1991
        %v1993 = vmul.f32 %v1972, 1.442695
        %v1994 = vpow.pop %v1993
        %v1995 = vmul.f32 %v1973, 1.442695
        %v1996 = vpow.pop %v1995
        %v1997 = vmul.f32 %v1974, 1.442695
        %v1998 = vpow.pop %v1997
        %v1999 = vmul.f32 %v1975, 1.442695
        %v2000 = vpow.pop %v1999
        %v2001 = vmul.f32 %v1976, 1.442695
        %v2002 = vpow.pop %v2001
        %v2003 = vmul.f32 %v1977, 1.442695
        %v2004 = vpow.pop %v2003
        %v2005 = vmul.f32 %v1978, 1.442695
        %v2006 = vpow.pop %v2005
        %v2007 = vmul.f32 %v1979, 1.442695
        %v2008 = vpow.pop %v2007
        %v2009 = vmul.f32 %v1980, 1.442695
        %v2010 = vpow.pop %v2009
        %v2011 = vmul.f32 %v1981, 1.442695
        %v2012 = vpow.pop %v2011
        %v2013 = vmul.f32 %v1982, 1.442695
        %v2014 = vpow.pop %v2013
        %v2015 = vadd.f32 %v1984, 1.0
        %v2016 = vadd.f32 %v1986, 1.0
        %v2017 = vadd.f32 %v1988, 1.0
        %v2018 = vadd.f32 %v1990, 1.0
        %v2019 = vadd.f32 %v1992, 1.0
        %v2020 = vadd.f32 %v1994, 1.0
        %v2021 = vadd.f32 %v1996, 1.0
        %v2022 = vadd.f32 %v1998, 1.0
        %v2023 = vadd.f32 %v2000, 1.0
        %v2024 = vadd.f32 %v2002, 1.0
        %v2025 = vadd.f32 %v2004, 1.0
        %v2026 = vadd.f32 %v2006, 1.0
        %v2027 = vadd.f32 %v2008, 1.0
        %v2028 = vadd.f32 %v2010, 1.0
        %v2029 = vadd.f32 %v2012, 1.0
        %v2030 = vadd.f32 %v2014, 1.0
        %v2031 = vrcp.pop %v2015
        %v2032 = vmul.f32 1.0, %v2031
        %v2033 = vrcp.pop %v2016
        %v2034 = vmul.f32 1.0, %v2033
        %v2035 = vrcp.pop %v2017
        %v2036 = vmul.f32 1.0, %v2035
        %v2037 = vrcp.pop %v2018
        %v2038 = vmul.f32 1.0, %v2037
        %v2039 = vrcp.pop %v2019
        %v2040 = vmul.f32 1.0, %v2039
        %v2041 = vrcp.pop %v2020
        %v2042 = vmul.f32 1.0, %v2041
        %v2043 = vrcp.pop %v2021
        %v2044 = vmul.f32 1.0, %v2043
        %v2045 = vrcp.pop %v2022
        %v2046 = vmul.f32 1.0, %v2045
        %v2047 = vrcp.pop %v2023
        %v2048 = vmul.f32 1.0, %v2047
        %v2049 = vrcp.pop %v2024
        %v2050 = vmul.f32 1.0, %v2049
        %v2051 = vrcp.pop %v2025
        %v2052 = vmul.f32 1.0, %v2051
        %v2053 = vrcp.pop %v2026
        %v2054 = vmul.f32 1.0, %v2053
        %v2055 = vrcp.pop %v2027
        %v2056 = vmul.f32 1.0, %v2055
        %v2057 = vrcp.pop %v2028
        %v2058 = vmul.f32 1.0, %v2057
        %v2059 = vrcp.pop %v2029
        %v2060 = vmul.f32 1.0, %v2059
        %v2061 = vrcp.pop %v2030
        %v2062 = vmul.f32 1.0, %v2061
        %v2063 = vmul.f32 %v1889, %v2032
        %v2064 = vmul.f32 %v1893, %v2034
        %v2065 = vmul.f32 %v1899, %v2036
        %v2066 = vmul.f32 %v1903, %v2038
        %v2067 = vmul.f32 %v1909, %v2040
        %v2068 = vmul.f32 %v1913, %v2042
        %v2069 = vmul.f32 %v1919, %v2044
        %v2070 = vmul.f32 %v1923, %v2046
        %v2071 = vmul.f32 %v1929, %v2048
        %v2072 = vmul.f32 %v1933, %v2050
        %v2073 = vmul.f32 %v1939, %v2052
        %v2074 = vmul.f32 %v1943, %v2054
        %v2075 = vmul.f32 %v1949, %v2056
        %v2076 = vmul.f32 %v1953, %v2058
        %v2077 = vmul.f32 %v1959, %v2060
        %v2078 = vmul.f32 %v1963, %v2062
        %v2079 = vrot.slane %v1342, 4
        %v2080 = vrot.slane %v1344, 4
        %v2081 = vsel %vm1086, %v2079, %v2080
        %v2082 = vrot.slane %v1346, 4
        %v2083 = vsel %vm1086, %v2080, %v2082
        %v2084 = vrot.slane %v1348, 4
        %v2085 = vsel %vm1086, %v2082, %v2084
        %v2086 = vrot.slane %v1350, 4
        %v2087 = vsel %vm1086, %v2084, %v2086
        %v2088 = vrot.slane %v1352, 4
        %v2089 = vsel %vm1086, %v2086, %v2088
        %v2090 = vrot.slane %v1354, 4
        %v2091 = vsel %vm1086, %v2088, %v2090
        %v2092 = vrot.slane %v1356, 4
        %v2093 = vsel %vm1086, %v2090, %v2092
        %v2094 = vrot.slane %v1355, 4
        %v2095 = vsel %vm1086, %v2092, %v2094
        %v2105 = vunpack.c.l.bf16 %v2081
        %v2106 = vunpack.c.h.bf16 %v2081
        %v2107 = vunpack.c.l.bf16 %v2083
        %v2108 = vunpack.c.h.bf16 %v2083
        %v2109 = vunpack.c.l.bf16 %v2085
        %v2110 = vunpack.c.h.bf16 %v2085
        %v2111 = vunpack.c.l.bf16 %v2087
        %v2112 = vunpack.c.h.bf16 %v2087
        %v2113 = vunpack.c.l.bf16 %v2089
        %v2114 = vunpack.c.h.bf16 %v2089
        %v2115 = vunpack.c.l.bf16 %v2091
        %v2116 = vunpack.c.h.bf16 %v2091
        %v2117 = vunpack.c.l.bf16 %v2093
        %v2118 = vunpack.c.h.bf16 %v2093
        %v2119 = vunpack.c.l.bf16 %v2095
        %v2120 = vunpack.c.h.bf16 %v2095
        %v2121 = vunpack.c.l.bf16 %v2094
        %v2139 = vrot.slane %v2105, 6
        %v2140 = vrot.slane %v2106, 6
        %v2141 = vsel %vm1147, %v2139, %v2140
        %v2142 = vrot.slane %v2107, 6
        %v2143 = vsel %vm1147, %v2140, %v2142
        %v2144 = vrot.slane %v2108, 6
        %v2145 = vsel %vm1147, %v2142, %v2144
        %v2146 = vrot.slane %v2109, 6
        %v2147 = vsel %vm1147, %v2144, %v2146
        %v2148 = vrot.slane %v2110, 6
        %v2149 = vsel %vm1147, %v2146, %v2148
        %v2150 = vrot.slane %v2111, 6
        %v2151 = vsel %vm1147, %v2148, %v2150
        %v2152 = vrot.slane %v2112, 6
        %v2153 = vsel %vm1147, %v2150, %v2152
        %v2154 = vrot.slane %v2113, 6
        %v2155 = vsel %vm1147, %v2152, %v2154
        %v2156 = vrot.slane %v2114, 6
        %v2157 = vsel %vm1147, %v2154, %v2156
        %v2158 = vrot.slane %v2115, 6
        %v2159 = vsel %vm1147, %v2156, %v2158
        %v2160 = vrot.slane %v2116, 6
        %v2161 = vsel %vm1147, %v2158, %v2160
        %v2162 = vrot.slane %v2117, 6
        %v2163 = vsel %vm1147, %v2160, %v2162
        %v2164 = vrot.slane %v2118, 6
        %v2165 = vsel %vm1147, %v2162, %v2164
        %v2166 = vrot.slane %v2119, 6
        %v2167 = vsel %vm1147, %v2164, %v2166
        %v2168 = vrot.slane %v2120, 6
        %v2169 = vsel %vm1147, %v2166, %v2168
        %v2170 = vrot.slane %v2121, 6
        %v2171 = vsel %vm1147, %v2168, %v2170
        %v2188 = vadd.f32 %v2063, %v2141
        %v2189 = vadd.f32 %v2064, %v2143
        %v2190 = vadd.f32 %v2065, %v2145
        %v2191 = vadd.f32 %v2066, %v2147
        %v2192 = vadd.f32 %v2067, %v2149
        %v2193 = vadd.f32 %v2068, %v2151
        %v2194 = vadd.f32 %v2069, %v2153
        %v2195 = vadd.f32 %v2070, %v2155
        %v2196 = vadd.f32 %v2071, %v2157
        %v2197 = vadd.f32 %v2072, %v2159
        %v2198 = vadd.f32 %v2073, %v2161
        %v2199 = vadd.f32 %v2074, %v2163
        %v2200 = vadd.f32 %v2075, %v2165
        %v2201 = vadd.f32 %v2076, %v2167
        %v2202 = vadd.f32 %v2077, %v2169
        %v2203 = vadd.f32 %v2078, %v2171
        %2204 = vst [vmem:[%s206] sm:$0xff] %v2188
        %2205 = vst [vmem:[%s206 + $0x8] sm:$0xff] %v2189
        %2206 = vst [vmem:[%s206 + $0x10] sm:$0xff] %v2190
        %2207 = vst [vmem:[%s206 + $0x18] sm:$0xff] %v2191
        %2208 = vst [vmem:[%s206 + $0x20] sm:$0xff] %v2192
        %2209 = vst [vmem:[%s206 + $0x28] sm:$0xff] %v2193
        %2210 = vst [vmem:[%s206 + $0x30] sm:$0xff] %v2194
        %2211 = vst [vmem:[%s206 + $0x38] sm:$0xff] %v2195
        %2212 = vst [vmem:[%s206 + $0x40] sm:$0xff] %v2196
        %2213 = vst [vmem:[%s206 + $0x48] sm:$0xff] %v2197
        %2214 = vst [vmem:[%s206 + $0x50] sm:$0xff] %v2198
        %2215 = vst [vmem:[%s206 + $0x58] sm:$0xff] %v2199
        %2216 = vst [vmem:[%s206 + $0x60] sm:$0xff] %v2200
        %2217 = vst [vmem:[%s206 + $0x68] sm:$0xff] %v2201
        %2218 = vst [vmem:[%s206 + $0x70] sm:$0xff] %v2202
        %2219 = vst [vmem:[%s206 + $0x78] sm:$0xff] %v2203
        %v2221 = vcombine.high %v1243, %v1243
        %v2223 = vunpack.c.l.s4 1983009808
        %v2224 = vunpack.c.0.s8 %v2223
        %v2225 = vlaneseq
        %v2226 = vshrl.u32 %v2225, 7
        %v2227 = vsub.s32 %v2224, %v2226
        %v2228 = vrot.slane %v2221, %v2227
        %v2229 = vcombine.high %v2228, %v2228
        %2231 = vst [vmem:[#allocation3] sm:$0x2] %v2229
        %s2232 = sand.u32 %s112, 1
        %s2233 = scalar_lea.sflag [#allocation6], %s2232
        %s2234 = sand.u32 %s112, 1
        %s2235 = smul.addr %s2234, 128
        %s2236 = scalar_lea.vmem [#allocation7], %s2235
        // Predicated region
        $region41: #{causal_conv_net.1} parent=31 // pred_check
          %p2237 = pneg %p122
        $region42: #{causal_conv_net.1} parent=31 // pred_check_branch
          %2239 = sbr.rel (%p2237) target = $region44
        $region43: #{causal_conv_net.1} parent=31 // pred_region
          %s2240 = smul.u32 16, %s25
          %s2242 = ssub.s32 2048, 2048
          %2243 = vsyncadd %s2233, %s2242
          %s2244 = smul.addr %s24, 32
          %s2245 = sadd.s32 %s2240, %s2244
          %s2246 = smul.addr %s2245, 128
          %s2247 = scalar_lea.hbm %s3, %s2246
          %s2248 = sshll.u32 %s2236, 4
          %s2249 = int_to_ptr.vmem [resolvable:$true] %s2248
          %2254 = dma.vmem_to_hbm [thread:$0]  %s2249, 2048, %s2247, %s2233, 128, 128, 8
        $region44: #{causal_conv_net.1} parent=31 // pred_fallthru
          _
      $region32: #{causal_conv_net.1} parent=5 // pred_fallthru
        _
      %p2255 = scmp.le.s32.totalorder 2, %s15
      // Predicated region
      $region45: #{causal_conv_net.1} parent=5 // pred_check
        %p2256 = pneg %p2255
      $region46: #{causal_conv_net.1} parent=5 // pred_check_branch
        %2258 = sbr.rel (%p2256) target = $region48
      $region47: #{causal_conv_net.1} parent=5 // pred_region
        %s2259 = ssub.s32 %s15, 2
        // Predicated region
        $region49: #{causal_conv_net.1} parent=47 // pred_check
          %p2260 = pneg %p128
        $region50: #{causal_conv_net.1} parent=47 // pred_check_branch
          %2262 = sbr.rel (%p2260) target = $region52
        $region51: #{causal_conv_net.1} parent=47 // pred_region
          %s2263 = sand.u32 %s113, 1
          %s2264 = scalar_lea.sflag [#allocation6], %s2263
          %s2265 = sand.u32 %s113, 1
          %s2266 = smul.addr %s2265, 128
          %s2267 = scalar_lea.vmem [#allocation7], %s2266
          %2268 = dma.done %s2264, 2048
        $region52: #{causal_conv_net.1} parent=47 // pred_fallthru
          _
      $region48: #{causal_conv_net.1} parent=5 // pred_fallthru
        _
    $region6: #{causal_conv_net.1} parent=1 // loop_footer
      %s19 = sadd.s32 1, %s15
    $region7: #{causal_conv_net.1} parent=1 // loop_footer_branch
      %14 = sbr.rel target = $region3
    $region8: #{causal_conv_net.1} parent=1 // loop_exit
      _
    %2269 = vsyncpa [#allocation5], 1
    %s2270 = scalar_lea.sflag [#allocation5], 1
    %2271 = vsyncpa %s2270, 1
    %2272 = vsyncpa [#allocation6], 1
    %s2273 = scalar_lea.sflag [#allocation6], 1
    %2274 = vsyncpa %s2273, 1

</llo_original>
